<compile_context>
chip_gen: v7x
topology: tpu7x:2x2x1
jax: 0.10.0
libtpu: 0.0.40
codegen_flags: <defaults>
</compile_context>

<pallas_src>
import functools

import jax
import jax.numpy as jnp
import numpy as np
from jax import lax
from jax.experimental import pallas as pl
from jax.experimental.pallas import tpu as pltpu


def sent_encoder_kernel(x_ref, w1_ref, p2_ref, o_ref, *, E):
    """x_ref: (Lp, BT) matmul-dtype; w1_ref: (3C, Lp); p2_ref: (C, 4) f32; o_ref: (1, BT) f32."""
    C = w1_ref.shape[0] // 3
    BT = x_ref.shape[1]                 # lane tile = (sentences-per-tile) * E

    # Lane masks: conv edges coincide with the packed batch boundaries (BT % E == 0).
    lane = lax.broadcasted_iota(jnp.int32, (1, BT), 1)
    at_left = (lane % E) == 0           # e == 0    -> tap at (e-1) is out of range
    at_right = (lane % E) == (E - 1)    # e == E-1  -> tap at (e+1) is out of range

    def shift_r(t):                     # y[..., d] = t[..., d-1], zeroed where e == 0
        return jnp.where(at_left, 0.0, pltpu.roll(t, shift=1, axis=1))

    def shift_l(t):                     # y[..., d] = t[..., d+1], zeroed where e == E-1
        return jnp.where(at_right, 0.0, pltpu.roll(t, shift=t.shape[1] - 1, axis=1))

    # Conv1d(in=50, out=C, k=3, pad=1): ONE MXU matmul covers all taps, all batch lanes.
    # (bias b1 is already folded into the center-tap block via the ones-row in xp.)
    h_all = jnp.dot(w1_ref[...], x_ref[...],
                    preferred_element_type=jnp.float32)          # (3C, BT) f32
    h = (shift_r(h_all[0 * C:1 * C])       # tap k=0 reads input at e-1
         + h_all[1 * C:2 * C]              # tap k=1 (center, includes b1)
         + shift_l(h_all[2 * C:3 * C]))    # tap k=2 reads input at e+1

    # torch.max(out, dim=1)
    pooled = jnp.max(h, axis=0, keepdims=True)                   # (1, BT)

    # Conv1d(in=1, out=C, k=3, pad=1): broadcast MAC over 3 taps, params coalesced in p2.
    p2 = p2_ref[...]                                             # (C, 4) = [w2_k0,k1,k2, b2]
    h2 = (p2[:, 3:4]
          + p2[:, 0:1] * shift_r(pooled)
          + p2[:, 1:2] * pooled
          + p2[:, 2:3] * shift_l(pooled))                        # (C, BT)

    # torch.max(out2, dim=1) -> lane-dense (1, BT) store (unmasked vst).
    o_ref[...] = jnp.max(h2, axis=0, keepdims=True)


def sent_encoder(sent, emb_table, w1, b1, w2, b2, *,
                 be_tile_target=2048, matmul_dtype=jnp.bfloat16):
    """sent: (B, L=50) int32; emb_table: (V, E); w1: (C, 50, 3); w2: (C, 1, 3)."""
    B, L = sent.shape
    C = w1.shape[0]
    E = emb_table.shape[1]

    # Lane packing granularity: tiles must be a multiple of 128 lanes AND of E so that
    # sentence/conv boundaries never split across a tile.
    lane_gran = int(np.lcm(128, E))
    b_gran = lane_gran // E
    pad_b = (-B) % b_gran
    if pad_b:
        sent = jnp.concatenate([sent, jnp.zeros((pad_b, L), sent.dtype)], axis=0)
    Bp = B + pad_b
    BE = Bp * E

    # Largest lane tile that divides BE and stays <= target (keeps vst unmasked; sized
    # well under v7x's 32 MiB scoped VMEM even double-buffered).
    be_tile = lane_gran
    cand = lane_gran
    limit = min(BE, be_tile_target)
    while cand <= limit:
        if BE % cand == 0:
            be_tile = cand
        cand += lane_gran
    grid = (BE // be_tile,)

    # Pad contraction dim 50 -> 64 (divisible by 8 and 16); row L is the ones-row that
    # carries the conv-1 bias through the matmul.
    Lp = 64
    assert Lp >= L + 1

    # --- Glue (layout plumbing, no hot-path compute) -------------------------------
    # Embedding gather directly into the lane-packed layout: xp[l, b*E+e] = emb[sent[b,l], e].
    xp = emb_table[sent.T].reshape(L, BE)                               # (L, BE)
    ones_row = jnp.ones((1, BE), emb_table.dtype)
    zpad = jnp.zeros((Lp - L - 1, BE), emb_table.dtype)
    xp = jnp.concatenate([xp, ones_row, zpad], axis=0).astype(matmul_dtype)   # (Lp, BE)

    # Tap-major stacked conv-1 weights; b1 folded into the center-tap block's ones column.
    w1s = jnp.zeros((3 * C, Lp), jnp.float32)
    w1s = w1s.at[:, :L].set(jnp.transpose(w1, (2, 0, 1)).reshape(3 * C, L).astype(jnp.float32))
    w1s = w1s.at[C:2 * C, L].set(b1.astype(jnp.float32))
    w1s = w1s.astype(matmul_dtype)

    # Coalesced conv-2 params: one tiny input instead of three.
    p2 = jnp.concatenate([w2.reshape(C, 3), b2.reshape(C, 1)], axis=1).astype(jnp.float32)

    flops = 2 * (3 * C) * Lp * BE + 8 * C * BE
    bytes_accessed = (xp.size * xp.dtype.itemsize
                      + w1s.size * w1s.dtype.itemsize
                      + p2.size * 4 + BE * 4)

    out_packed = pl.pallas_call(
        functools.partial(sent_encoder_kernel, E=E),
        out_shape=jax.ShapeDtypeStruct((1, BE), jnp.float32),
        grid=grid,
        in_specs=[
            pl.BlockSpec((Lp, be_tile), lambda i: (0, i)),       # activation: lane-tiled
            pl.BlockSpec((3 * C, Lp), lambda i: (0, 0)),         # weights: fetched once
            pl.BlockSpec((C, 4), lambda i: (0, 0)),              # conv-2 params: fetched once
        ],
        out_specs=pl.BlockSpec((1, be_tile), lambda i: (0, i)),  # lane-dense output
        compiler_params=pltpu.CompilerParams(
            dimension_semantics=("parallel",)),                  # shards across v7x's 2 TCs
        cost_estimate=pl.CostEstimate(flops=flops, transcendentals=0,
                                      bytes_accessed=bytes_accessed),
    )(xp, w1s, p2)

    out = out_packed.reshape(Bp, E)
    return out[:B]


def sent_encoder_ref(sent, emb_table, w1, b1, w2, b2):
    """Pure-JAX reference mirroring the PyTorch forward exactly (all f32)."""
    x = emb_table[sent].astype(jnp.float32)                       # (B, 50, E)
    out1 = lax.conv_general_dilated(
        x, w1, window_strides=(1,), padding=((1, 1),),
        dimension_numbers=("NCH", "OIH", "NCH")) + b1[None, :, None]
    pooled = jnp.max(out1, axis=1)                                # (B, E)
    out2 = lax.conv_general_dilated(
        pooled[:, None, :], w2, window_strides=(1,), padding=((1, 1),),
        dimension_numbers=("NCH", "OIH", "NCH")) + b2[None, :, None]
    return jnp.max(out2, axis=1)                                  # (B, E)


if __name__ == "__main__":
    # Conv1d(50, conv_dim, 3) hard-codes in_channels=50 -> sequence length L = 50.
    # B=64, E=64 -> B*E = 4096 lanes -> 2048-lane tiles, 2-step "parallel" grid (shows
    # pipelining / megacore sharding while staying tiny: 3200 tokens total).
    B, L, E, C, V = 64, 50, 64, 8, 100   # batch, seq(=50), emb dim, conv_dim, vocab

    key = jax.random.PRNGKey(0)
    k_emb, k_w1, k_b1, k_w2, k_b2, k_sent = jax.random.split(key, 6)

    emb_table = jax.random.normal(k_emb, (V, E), dtype=jnp.float32)
    w1 = 0.05 * jax.random.normal(k_w1, (C, L, 3), dtype=jnp.float32)   # Conv1d(50->C)
    b1 = 0.05 * jax.random.normal(k_b1, (C,), dtype=jnp.float32)
    w2 = 0.05 * jax.random.normal(k_w2, (C, 1, 3), dtype=jnp.float32)   # Conv1d(1->C)
    b2 = 0.05 * jax.random.normal(k_b2, (C,), dtype=jnp.float32)
    sent = jax.random.randint(k_sent, (B, L), 0, V, dtype=jnp.int32)

    out = jax.block_until_ready(sent_encoder(sent, emb_table, w1, b1, w2, b2))
    ref = jax.block_until_ready(sent_encoder_ref(sent, emb_table, w1, b1, w2, b2))

    np.testing.assert_allclose(np.asarray(out), np.asarray(ref), rtol=2e-2, atol=2e-2)
    print("KERNEL_OK")
</pallas_src>

<mosaic_0001>
module attributes {stable_mosaic.version = 11 : i64} {
  func.func @sent_encoder_kernel(%arg0: i32, %arg1: memref<64x2048xbf16, #tpu.memory_space<vmem>>, %arg2: memref<24x64xbf16, #tpu.memory_space<vmem>>, %arg3: memref<8x4xf32, #tpu.memory_space<vmem>>, %arg4: memref<1x2048xf32, #tpu.memory_space<vmem>>) attributes {dimension_semantics = [#tpu.dimension_semantics<parallel>], iteration_bounds = array<i64: 2>, scalar_prefetch = 0 : i64, scratch_operands = 0 : i64, tpu.core_type = #tpu.core_type<tc>, window_params = [{transform_indices = @transform_0, window_bounds = array<i64: 64, 2048>}, {pipeline_mode = #tpu.pipeline_mode<synchronous>, transform_indices = @transform_1, window_bounds = array<i64: 24, 64>}, {pipeline_mode = #tpu.pipeline_mode<synchronous>, transform_indices = @transform_2, window_bounds = array<i64: 8, 4>}, {transform_indices = @transform_3, window_bounds = array<i64: 1, 2048>}]} {
    %0 = tpu.iota {dimensions = array<i32: 1>} : vector<1x2048xi32>
    %c64_i32 = arith.constant 64 : i32
    %c0_i32 = arith.constant 0 : i32
    %1 = arith.cmpi eq, %c64_i32, %c0_i32 : i32
    %c1_i32 = arith.constant 1 : i32
    %2 = arith.select %1, %c1_i32, %c64_i32 : i32
    %3 = vector.broadcast %2 : i32 to vector<1x2048xi32>
    %4 = arith.remsi %0, %3 : vector<1x2048xi32>
    %c0_i32_0 = arith.constant 0 : i32
    %5 = vector.broadcast %c0_i32_0 : i32 to vector<1x2048xi32>
    %6 = arith.cmpi ne, %4, %5 : vector<1x2048xi32>
    %c0_i32_1 = arith.constant 0 : i32
    %7 = vector.broadcast %c0_i32_1 : i32 to vector<1x2048xi32>
    %8 = arith.cmpi slt, %4, %7 : vector<1x2048xi32>
    %c0_i32_2 = arith.constant 0 : i32
    %9 = arith.cmpi slt, %2, %c0_i32_2 : i32
    %10 = vector.broadcast %9 : i1 to vector<1x2048xi1>
    %11 = vector.broadcast %10 : vector<1x2048xi1> to vector<1x2048xi1>
    %12 = arith.xori %8, %11 : vector<1x2048xi1>
    %13 = arith.andi %12, %6 : vector<1x2048xi1>
    %14 = vector.broadcast %2 : i32 to vector<1x2048xi32>
    %15 = arith.addi %4, %14 : vector<1x2048xi32>
    %16 = arith.select %13, %15, %4 : vector<1x2048xi1>, vector<1x2048xi32>
    %c0_i32_3 = arith.constant 0 : i32
    %17 = vector.broadcast %c0_i32_3 : i32 to vector<1x2048xi32>
    %18 = arith.cmpi eq, %16, %17 : vector<1x2048xi32>
    %c64_i32_4 = arith.constant 64 : i32
    %c0_i32_5 = arith.constant 0 : i32
    %19 = arith.cmpi eq, %c64_i32_4, %c0_i32_5 : i32
    %c1_i32_6 = arith.constant 1 : i32
    %20 = arith.select %19, %c1_i32_6, %c64_i32_4 : i32
    %21 = vector.broadcast %20 : i32 to vector<1x2048xi32>
    %22 = arith.remsi %0, %21 : vector<1x2048xi32>
    %c0_i32_7 = arith.constant 0 : i32
    %23 = vector.broadcast %c0_i32_7 : i32 to vector<1x2048xi32>
    %24 = arith.cmpi ne, %22, %23 : vector<1x2048xi32>
    %c0_i32_8 = arith.constant 0 : i32
    %25 = vector.broadcast %c0_i32_8 : i32 to vector<1x2048xi32>
    %26 = arith.cmpi slt, %22, %25 : vector<1x2048xi32>
    %c0_i32_9 = arith.constant 0 : i32
    %27 = arith.cmpi slt, %20, %c0_i32_9 : i32
    %28 = vector.broadcast %27 : i1 to vector<1x2048xi1>
    %29 = vector.broadcast %28 : vector<1x2048xi1> to vector<1x2048xi1>
    %30 = arith.xori %26, %29 : vector<1x2048xi1>
    %31 = arith.andi %30, %24 : vector<1x2048xi1>
    %32 = vector.broadcast %20 : i32 to vector<1x2048xi32>
    %33 = arith.addi %22, %32 : vector<1x2048xi32>
    %34 = arith.select %31, %33, %22 : vector<1x2048xi1>, vector<1x2048xi32>
    %c63_i32 = arith.constant 63 : i32
    %35 = vector.broadcast %c63_i32 : i32 to vector<1x2048xi32>
    %36 = arith.cmpi eq, %34, %35 : vector<1x2048xi32>
    %c0 = arith.constant 0 : index
    %c0_10 = arith.constant 0 : index
    %37 = vector.load %arg2[%c0, %c0_10] : memref<24x64xbf16, #tpu.memory_space<vmem>>, vector<24x64xbf16>
    %c0_11 = arith.constant 0 : index
    %c0_12 = arith.constant 0 : index
    %38 = vector.load %arg1[%c0_11, %c0_12] : memref<64x2048xbf16, #tpu.memory_space<vmem>>, vector<64x2048xbf16>
    %cst = arith.constant dense<0.000000e+00> : vector<24x2048xf32>
    %39 = tpu.matmul %37, %38, %cst {dimension_numbers = #tpu.dot_dimension_numbers<[1], [0], [0], [1], [0, 0, 1, 1], [], []>} : vector<24x64xbf16>, vector<64x2048xbf16>, vector<24x2048xf32> -> vector<24x2048xf32>
    %40 = vector.extract_strided_slice %39 {offsets = [0, 0], sizes = [8, 2048], strides = [1, 1]} : vector<24x2048xf32> to vector<8x2048xf32>
    %c1_i32_13 = arith.constant 1 : i32
    %41 = tpu.dynamic_rotate %40 by %c1_i32_13 dim 1 : vector<8x2048xf32>, i32 -> vector<8x2048xf32>
    %cst_14 = arith.constant 0.000000e+00 : f32
    %42 = vector.shape_cast %18 : vector<1x2048xi1> to vector<1x2048xi1>
    %43 = vector.broadcast %42 : vector<1x2048xi1> to vector<8x2048xi1>
    %44 = vector.broadcast %cst_14 : f32 to vector<8x2048xf32>
    %45 = arith.select %43, %44, %41 : vector<8x2048xi1>, vector<8x2048xf32>
    %46 = vector.extract_strided_slice %39 {offsets = [8, 0], sizes = [8, 2048], strides = [1, 1]} : vector<24x2048xf32> to vector<8x2048xf32>
    %47 = arith.addf %45, %46 : vector<8x2048xf32>
    %48 = vector.extract_strided_slice %39 {offsets = [16, 0], sizes = [8, 2048], strides = [1, 1]} : vector<24x2048xf32> to vector<8x2048xf32>
    %c2047_i32 = arith.constant 2047 : i32
    %49 = tpu.dynamic_rotate %48 by %c2047_i32 dim 1 : vector<8x2048xf32>, i32 -> vector<8x2048xf32>
    %cst_15 = arith.constant 0.000000e+00 : f32
    %50 = vector.shape_cast %36 : vector<1x2048xi1> to vector<1x2048xi1>
    %51 = vector.broadcast %50 : vector<1x2048xi1> to vector<8x2048xi1>
    %52 = vector.broadcast %cst_15 : f32 to vector<8x2048xf32>
    %53 = arith.select %51, %52, %49 : vector<8x2048xi1>, vector<8x2048xf32>
    %54 = arith.addf %47, %53 : vector<8x2048xf32>
    %cst_16 = arith.constant dense<0xFF800000> : vector<2048xf32>
    %55 = vector.multi_reduction <maximumf>, %54, %cst_16 [0] : vector<8x2048xf32> to vector<2048xf32>
    %56 = vector.shape_cast %55 : vector<2048xf32> to vector<1x2048xf32>
    %c0_17 = arith.constant 0 : index
    %c0_18 = arith.constant 0 : index
    %57 = vector.load %arg3[%c0_17, %c0_18] : memref<8x4xf32, #tpu.memory_space<vmem>>, vector<8x4xf32>
    %58 = vector.extract_strided_slice %57 {offsets = [0, 3], sizes = [8, 1], strides = [1, 1]} : vector<8x4xf32> to vector<8x1xf32>
    %59 = vector.extract_strided_slice %57 {offsets = [0, 0], sizes = [8, 1], strides = [1, 1]} : vector<8x4xf32> to vector<8x1xf32>
    %c1_i32_19 = arith.constant 1 : i32
    %60 = tpu.dynamic_rotate %56 by %c1_i32_19 dim 1 : vector<1x2048xf32>, i32 -> vector<1x2048xf32>
    %cst_20 = arith.constant 0.000000e+00 : f32
    %61 = vector.broadcast %cst_20 : f32 to vector<1x2048xf32>
    %62 = arith.select %18, %61, %60 : vector<1x2048xi1>, vector<1x2048xf32>
    %63 = vector.broadcast %59 : vector<8x1xf32> to vector<8x2048xf32>
    %64 = vector.broadcast %62 : vector<1x2048xf32> to vector<8x2048xf32>
    %65 = arith.mulf %63, %64 : vector<8x2048xf32>
    %66 = vector.broadcast %58 : vector<8x1xf32> to vector<8x2048xf32>
    %67 = arith.addf %66, %65 : vector<8x2048xf32>
    %68 = vector.extract_strided_slice %57 {offsets = [0, 1], sizes = [8, 1], strides = [1, 1]} : vector<8x4xf32> to vector<8x1xf32>
    %69 = vector.broadcast %68 : vector<8x1xf32> to vector<8x2048xf32>
    %70 = vector.broadcast %56 : vector<1x2048xf32> to vector<8x2048xf32>
    %71 = arith.mulf %69, %70 : vector<8x2048xf32>
    %72 = arith.addf %67, %71 : vector<8x2048xf32>
    %73 = vector.extract_strided_slice %57 {offsets = [0, 2], sizes = [8, 1], strides = [1, 1]} : vector<8x4xf32> to vector<8x1xf32>
    %c2047_i32_21 = arith.constant 2047 : i32
    %74 = tpu.dynamic_rotate %56 by %c2047_i32_21 dim 1 : vector<1x2048xf32>, i32 -> vector<1x2048xf32>
    %cst_22 = arith.constant 0.000000e+00 : f32
    %75 = vector.broadcast %cst_22 : f32 to vector<1x2048xf32>
    %76 = arith.select %36, %75, %74 : vector<1x2048xi1>, vector<1x2048xf32>
    %77 = vector.broadcast %73 : vector<8x1xf32> to vector<8x2048xf32>
    %78 = vector.broadcast %76 : vector<1x2048xf32> to vector<8x2048xf32>
    %79 = arith.mulf %77, %78 : vector<8x2048xf32>
    %80 = arith.addf %72, %79 : vector<8x2048xf32>
    %cst_23 = arith.constant dense<0xFF800000> : vector<2048xf32>
    %81 = vector.multi_reduction <maximumf>, %80, %cst_23 [0] : vector<8x2048xf32> to vector<2048xf32>
    %82 = vector.shape_cast %81 : vector<2048xf32> to vector<1x2048xf32>
    %c0_24 = arith.constant 0 : index
    %c0_25 = arith.constant 0 : index
    %83 = vector.load %arg4[%c0_24, %c0_25] : memref<1x2048xf32, #tpu.memory_space<vmem>>, vector<1x2048xf32>
    tpu.vector_store %arg4[%c0_24, %c0_25], %82 {strides = array<i32>} : memref<1x2048xf32, #tpu.memory_space<vmem>>, vector<1x2048xf32>,
    return
  }
  func.func @transform_0(%arg0: i32) -> (i32, i32) {
    %c0_i32 = arith.constant 0 : i32
    %c0_i32_0 = arith.constant 0 : i32
    return %c0_i32, %arg0 : i32, i32
  }
  func.func @transform_1(%arg0: i32) -> (i32, i32) {
    %c0_i32 = arith.constant 0 : i32
    %c0_i32_0 = arith.constant 0 : i32
    %c0_i32_1 = arith.constant 0 : i32
    return %c0_i32, %c0_i32_0 : i32, i32
  }
  func.func @transform_2(%arg0: i32) -> (i32, i32) {
    %c0_i32 = arith.constant 0 : i32
    %c0_i32_0 = arith.constant 0 : i32
    %c0_i32_1 = arith.constant 0 : i32
    return %c0_i32, %c0_i32_0 : i32, i32
  }
  func.func @transform_3(%arg0: i32) -> (i32, i32) {
    %c0_i32 = arith.constant 0 : i32
    %c0_i32_0 = arith.constant 0 : i32
    return %c0_i32, %arg0 : i32, i32
  }
}

</mosaic_0001>

<llo_original>
// kernel: tpu_custom_call.1
$region0: #{tpu_custom_call.1}
  #allocation0 [shape = 'u32[]', space=smem, size = 0x4, offset = 0x4, fixed_abs, tag = 'smem constant byte address 0x4 - core index']
  #allocation1 [shape = 'u32[144,128]{1,0:T(1,128)}', space=vmem, size = 0x12000, scoped, tag = 'internal scratch']
  %s0 = inlined_call_operand.hbm [shape: bf16[64,4096], index: 0, kind: input, shape index: {}]
  %s1 = inlined_call_operand.vmem [shape: bf16[24,64], index: 1, kind: input, shape index: {}]
  %s2 = inlined_call_operand.vmem [shape: f32[8,4], index: 2, kind: input, shape index: {}]
  %s3 = inlined_call_operand.hbm [shape: f32[1,4096], index: 3, kind: output, shape index: {}]
  %s4 = sld [smem:[#allocation0]]
  $region49: #{tpu_custom_call.1} parent=0
    _
  %s6 = ssub.s32 1, %s4
  %s7 = scalar_select 0, %s6, %s4
  $region1: #{tpu_custom_call.1} parent=0
    #allocation2 [shape = 'u8[524288]{0}', space=vmem, size = 0x80000, scoped, tag = 'input window, operand 0']
    #allocation3 [shape = 's32[2]{0}', space=sflag, size = 0x8, scoped, tag = 'scoped memory for tpu_custom_call.1']
    #allocation4 [shape = 's32[2]{0}', space=sflag, size = 0x8, scoped, tag = 'scoped memory for tpu_custom_call.1']
    #allocation5 [shape = 'u8[16384]{0}', space=vmem, size = 0x4000, scoped, tag = 'output window, operand 0']
    %8 = vsyncpa [#allocation3], 0
    %s9 = scalar_lea.sflag [#allocation3], 1
    %10 = vsyncpa %s9, 0
    %11 = vsyncpa [#allocation4], 0
    %s12 = scalar_lea.sflag [#allocation4], 1
    %13 = vsyncpa %s12, 0
    loop: start=0, step=1, limit=4
    $region2: #{tpu_custom_call.1} parent=1 // loop_pre_header
      _
    $region3: #{tpu_custom_call.1} parent=1 // loop_header
      %s15 = sphi 0, %s19
      %p16 = scmp.ge.s32.totalorder %s15, 4
      %s25 = sphi 0, %s27
      %s28 = sphi 0, %s25
      %s29 = sphi 0, %s28
      %s45 = sphi 0, %s29
      %s49 = sphi 0, %s49
      %s51 = sphi 0, %s49
      %s52 = sphi 0, %s51
      %s66 = sphi 0, %s52
      %s70 = sphi 0, %s70
      %s72 = sphi 0, %s70
      %s73 = sphi 0, %s72
      %s87 = sphi 0, %s73
      %s93 = sphi 0, %s95
      %s96 = sphi 0, %s93
      %s97 = sphi 0, %s96
      %s113 = sphi 0, %s97
    $region4: #{tpu_custom_call.1} parent=1 // loop_header_branch
      %18 = sbr.rel (%p16) target = $region8
    $region5: #{tpu_custom_call.1} parent=1 // loop_body
      %s20 = ssub.s32 %s15, 1
      %s21 = ssub.s32 %s15, 2
      %s22 = sadd.s32 %s15, 1
      %s23 = ssub.s32 %s15, %s22
      %p24 = scmp.eq.s32.totalorder %s23, 0
      %s26 = sadd.s32 %s25, 1
      %s27 = scalar_select %p24, %s25, %s26
      %p30 = pneg %p24
      %p31 = scmp.eq.s32.totalorder %s15, 1
      %p32 = por %p30, %p31
      %p33 = scmp.ne.s32.totalorder %s25, %s28
      %p34 = scmp.eq.s32.totalorder %s15, 0
      %p35 = por %p33, %p34
      %p36 = scmp.ne.s32.totalorder %s25, %s28
      %p37 = scmp.eq.s32.totalorder %s20, 1
      %p38 = por %p36, %p37
      %p39 = scmp.ne.s32.totalorder %s28, %s29
      %p40 = scmp.eq.s32.totalorder %s20, 0
      %p41 = por %p39, %p40
      %p42 = scmp.ne.s32.totalorder %s28, %s29
      %p43 = scmp.eq.s32.totalorder %s21, 1
      %p44 = por %p42, %p43
      %p46 = scmp.ne.s32.totalorder %s29, %s45
      %p47 = scmp.eq.s32.totalorder %s21, 0
      %p48 = por %p46, %p47
      %s50 = sadd.s32 %s49, 1
      %p53 = scmp.eq.s32.totalorder %s15, 1
      %p54 = scmp.ne.s32.totalorder %s49, %s51
      %p55 = scmp.eq.s32.totalorder %s15, 0
      %p56 = por %p54, %p55
      %p57 = scmp.ne.s32.totalorder %s49, %s51
      %p58 = scmp.eq.s32.totalorder %s20, 1
      %p59 = por %p57, %p58
      %p60 = scmp.ne.s32.totalorder %s51, %s52
      %p61 = scmp.eq.s32.totalorder %s20, 0
      %p62 = por %p60, %p61
      %p63 = scmp.ne.s32.totalorder %s51, %s52
      %p64 = scmp.eq.s32.totalorder %s21, 1
      %p65 = por %p63, %p64
      %p67 = scmp.ne.s32.totalorder %s52, %s66
      %p68 = scmp.eq.s32.totalorder %s21, 0
      %p69 = por %p67, %p68
      %s71 = sadd.s32 %s70, 1
      %p74 = scmp.eq.s32.totalorder %s15, 1
      %p75 = scmp.ne.s32.totalorder %s70, %s72
      %p76 = scmp.eq.s32.totalorder %s15, 0
      %p77 = por %p75, %p76
      %p78 = scmp.ne.s32.totalorder %s70, %s72
      %p79 = scmp.eq.s32.totalorder %s20, 1
      %p80 = por %p78, %p79
      %p81 = scmp.ne.s32.totalorder %s72, %s73
      %p82 = scmp.eq.s32.totalorder %s20, 0
      %p83 = por %p81, %p82
      %p84 = scmp.ne.s32.totalorder %s72, %s73
      %p85 = scmp.eq.s32.totalorder %s21, 1
      %p86 = por %p84, %p85
      %p88 = scmp.ne.s32.totalorder %s73, %s87
      %p89 = scmp.eq.s32.totalorder %s21, 0
      %p90 = por %p88, %p89
      %s91 = ssub.s32 %s15, %s22
      %p92 = scmp.eq.s32.totalorder %s91, 0
      %s94 = sadd.s32 %s93, 1
      %s95 = scalar_select %p92, %s93, %s94
      %p98 = pneg %p92
      %p99 = scmp.eq.s32.totalorder %s15, 1
      %p100 = por %p98, %p99
      %p101 = scmp.ne.s32.totalorder %s93, %s96
      %p102 = scmp.eq.s32.totalorder %s15, 0
      %p103 = por %p101, %p102
      %p104 = scmp.ne.s32.totalorder %s93, %s96
      %p105 = scmp.eq.s32.totalorder %s20, 1
      %p106 = por %p104, %p105
      %p107 = scmp.ne.s32.totalorder %s96, %s97
      %p108 = scmp.eq.s32.totalorder %s20, 0
      %p109 = por %p107, %p108
      %p110 = scmp.ne.s32.totalorder %s96, %s97
      %p111 = scmp.eq.s32.totalorder %s21, 1
      %p112 = por %p110, %p111
      %p114 = scmp.ne.s32.totalorder %s97, %s113
      %p115 = scmp.eq.s32.totalorder %s21, 0
      %p116 = por %p114, %p115
      %p117 = scmp.le.s32.totalorder 1, %s15
      %p118 = scmp.lt.s32.totalorder %s15, 3
      %p119 = pnand %p117, %p118
      %p120 = pneg %p119
      // Predicated region
      $region9: #{tpu_custom_call.1} parent=5 // pred_check
        _
      $region10: #{tpu_custom_call.1} parent=5 // pred_check_branch
        %122 = sbr.rel (%p119) target = $region12
      $region11: #{tpu_custom_call.1} parent=5 // pred_region
        %s123 = ssub.s32 %s15, 1
        // Predicated region
        $region13: #{tpu_custom_call.1} parent=11 // pred_check
          %p124 = pneg %p62
        $region14: #{tpu_custom_call.1} parent=11 // pred_check_branch
          %126 = sbr.rel (%p124) target = $region16
        $region15: #{tpu_custom_call.1} parent=11 // pred_region
          _
        $region16: #{tpu_custom_call.1} parent=11 // pred_fallthru
          _
        // Predicated region
        $region17: #{tpu_custom_call.1} parent=11 // pred_check
          %p127 = pneg %p83
        $region18: #{tpu_custom_call.1} parent=11 // pred_check_branch
          %129 = sbr.rel (%p127) target = $region20
        $region19: #{tpu_custom_call.1} parent=11 // pred_region
          _
        $region20: #{tpu_custom_call.1} parent=11 // pred_fallthru
          _
      $region12: #{tpu_custom_call.1} parent=5 // pred_fallthru
        _
      %p130 = scmp.lt.s32.totalorder %s15, 2
      // Predicated region
      $region21: #{tpu_custom_call.1} parent=5 // pred_check
        %p131 = pneg %p130
      $region22: #{tpu_custom_call.1} parent=5 // pred_check_branch
        %133 = sbr.rel (%p131) target = $region24
      $region23: #{tpu_custom_call.1} parent=5 // pred_region
        // Predicated region
        $region25: #{tpu_custom_call.1} parent=23 // pred_check
          %p134 = pneg %p35
        $region26: #{tpu_custom_call.1} parent=23 // pred_check_branch
          %136 = sbr.rel (%p134) target = $region28
        $region27: #{tpu_custom_call.1} parent=23 // pred_region
          %s137 = sand.u32 %s25, 1
          %s138 = scalar_lea.sflag [#allocation3], %s137
          %s139 = sand.u32 %s25, 1
          %s140 = smul.addr %s139, 512
          %s141 = scalar_lea.vmem [#allocation2], %s140
          %s142 = smul.u32 16, %s15
          %s144 = ssub.s32 8192, 8192
          %145 = vsyncadd %s138, %s144
          %s146 = smul.addr %s142, 64
          %s147 = scalar_lea.hbm %s0, %s146
          %s148 = sshll.u32 %s141, 4
          %s149 = int_to_ptr.vmem [resolvable:$true] %s148
          %154 = dma.hbm_to_vmem [thread:$0]  %s147, 8192, %s149, %s138, 2048, 1024, 64
        $region28: #{tpu_custom_call.1} parent=23 // pred_fallthru
          _
      $region24: #{tpu_custom_call.1} parent=5 // pred_fallthru
        _
      %p155 = scmp.le.s32.totalorder 1, %s15
      %p156 = scmp.lt.s32.totalorder %s15, 3
      %p157 = pnand %p155, %p156
      %p158 = pneg %p157
      // Predicated region
      $region29: #{tpu_custom_call.1} parent=5 // pred_check
        _
      $region30: #{tpu_custom_call.1} parent=5 // pred_check_branch
        %160 = sbr.rel (%p157) target = $region32
      $region31: #{tpu_custom_call.1} parent=5 // pred_region
        %s161 = ssub.s32 %s15, 1
        %s162 = sand.u32 %s28, 1
        %s163 = scalar_lea.sflag [#allocation3], %s162
        %s164 = sand.u32 %s28, 1
        %s165 = smul.addr %s164, 512
        %s166 = scalar_lea.vmem [#allocation2], %s165
        // Predicated region
        $region33: #{tpu_custom_call.1} parent=31 // pred_check
          %p167 = pneg %p41
        $region34: #{tpu_custom_call.1} parent=31 // pred_check_branch
          %169 = sbr.rel (%p167) target = $region36
        $region35: #{tpu_custom_call.1} parent=31 // pred_region
          %170 = dma.done %s163, 8192
        $region36: #{tpu_custom_call.1} parent=31 // pred_fallthru
          _
        %s171 = sand.u32 %s28, 1
        %s172 = scalar_lea.sflag [#allocation3], %s171
        %s173 = sand.u32 %s28, 1
        %s174 = smul.addr %s173, 512
        %s175 = scalar_lea.vmem [#allocation2], %s174
        %p176 = pneg %p41
        %p177 = pneg %p38
        %p178 = pneg %p62
        %p179 = pneg %p59
        %p180 = pneg %p83
        %p181 = pneg %p80
        %p182 = pneg %p109
        %p183 = pneg %p106
        %s184 = sand.u32 %s96, 1
        %s185 = scalar_lea.sflag [#allocation4], %s184
        %s186 = sand.u32 %s96, 1
        %s187 = smul.addr %s186, 16
        %s188 = scalar_lea.vmem [#allocation5], %s187
        %s189 = smul.u32 16, %s20
        %s190 = smul.u32 16, %s20
        %v192 = vlaneseq
        %v193 = vand.u32 %v192, 127
        %v194 = vadd.s32 %v193, 128
        %v195 = vadd.s32 %v193, 256
        %v196 = vadd.s32 %v193, 384
        %v197 = vadd.s32 %v193, 512
        %v198 = vadd.s32 %v193, 640
        %v199 = vadd.s32 %v193, 768
        %v200 = vadd.s32 %v193, 896
        %v201 = vadd.s32 %v193, 1024
        %v202 = vadd.s32 %v193, 1152
        %v203 = vadd.s32 %v193, 1280
        %v204 = vadd.s32 %v193, 1408
        %v205 = vadd.s32 %v193, 1536
        %v206 = vadd.s32 %v193, 1664
        %v207 = vadd.s32 %v193, 1792
        %v208 = vadd.s32 %v193, 1920
        %vm209 = vcmp.lt.s32.totalorder %v193, 0
        %v210 = vsub.s32 0, %v193
        %v211 = vsel %vm209, %v210, %v193
        %v212 = vshrl.u32 %v211, 6
        %v213 = vand.u32 %v211, 63
        %v214 = vsub.s32 0, %v213
        %v215 = vsel %vm209, %v214, %v213
        %vm216 = vcmp.lt.s32.totalorder %v194, 0
        %v217 = vsub.s32 0, %v194
        %v218 = vsel %vm216, %v217, %v194
        %v219 = vshrl.u32 %v218, 6
        %v220 = vand.u32 %v218, 63
        %v221 = vsub.s32 0, %v220
        %v222 = vsel %vm216, %v221, %v220
        %vm223 = vcmp.lt.s32.totalorder %v195, 0
        %v224 = vsub.s32 0, %v195
        %v225 = vsel %vm223, %v224, %v195
        %v226 = vshrl.u32 %v225, 6
        %v227 = vand.u32 %v225, 63
        %v228 = vsub.s32 0, %v227
        %v229 = vsel %vm223, %v228, %v227
        %vm230 = vcmp.lt.s32.totalorder %v196, 0
        %v231 = vsub.s32 0, %v196
        %v232 = vsel %vm230, %v231, %v196
        %v233 = vshrl.u32 %v232, 6
        %v234 = vand.u32 %v232, 63
        %v235 = vsub.s32 0, %v234
        %v236 = vsel %vm230, %v235, %v234
        %vm237 = vcmp.lt.s32.totalorder %v197, 0
        %v238 = vsub.s32 0, %v197
        %v239 = vsel %vm237, %v238, %v197
        %v240 = vshrl.u32 %v239, 6
        %v241 = vand.u32 %v239, 63
        %v242 = vsub.s32 0, %v241
        %v243 = vsel %vm237, %v242, %v241
        %vm244 = vcmp.lt.s32.totalorder %v198, 0
        %v245 = vsub.s32 0, %v198
        %v246 = vsel %vm244, %v245, %v198
        %v247 = vshrl.u32 %v246, 6
        %v248 = vand.u32 %v246, 63
        %v249 = vsub.s32 0, %v248
        %v250 = vsel %vm244, %v249, %v248
        %vm251 = vcmp.lt.s32.totalorder %v199, 0
        %v252 = vsub.s32 0, %v199
        %v253 = vsel %vm251, %v252, %v199
        %v254 = vshrl.u32 %v253, 6
        %v255 = vand.u32 %v253, 63
        %v256 = vsub.s32 0, %v255
        %v257 = vsel %vm251, %v256, %v255
        %vm258 = vcmp.lt.s32.totalorder %v200, 0
        %v259 = vsub.s32 0, %v200
        %v260 = vsel %vm258, %v259, %v200
        %v261 = vshrl.u32 %v260, 6
        %v262 = vand.u32 %v260, 63
        %v263 = vsub.s32 0, %v262
        %v264 = vsel %vm258, %v263, %v262
        %vm265 = vcmp.lt.s32.totalorder %v201, 0
        %v266 = vsub.s32 0, %v201
        %v267 = vsel %vm265, %v266, %v201
        %v268 = vshrl.u32 %v267, 6
        %v269 = vand.u32 %v267, 63
        %v270 = vsub.s32 0, %v269
        %v271 = vsel %vm265, %v270, %v269
        %vm272 = vcmp.lt.s32.totalorder %v202, 0
        %v273 = vsub.s32 0, %v202
        %v274 = vsel %vm272, %v273, %v202
        %v275 = vshrl.u32 %v274, 6
        %v276 = vand.u32 %v274, 63
        %v277 = vsub.s32 0, %v276
        %v278 = vsel %vm272, %v277, %v276
        %vm279 = vcmp.lt.s32.totalorder %v203, 0
        %v280 = vsub.s32 0, %v203
        %v281 = vsel %vm279, %v280, %v203
        %v282 = vshrl.u32 %v281, 6
        %v283 = vand.u32 %v281, 63
        %v284 = vsub.s32 0, %v283
        %v285 = vsel %vm279, %v284, %v283
        %vm286 = vcmp.lt.s32.totalorder %v204, 0
        %v287 = vsub.s32 0, %v204
        %v288 = vsel %vm286, %v287, %v204
        %v289 = vshrl.u32 %v288, 6
        %v290 = vand.u32 %v288, 63
        %v291 = vsub.s32 0, %v290
        %v292 = vsel %vm286, %v291, %v290
        %vm293 = vcmp.lt.s32.totalorder %v205, 0
        %v294 = vsub.s32 0, %v205
        %v295 = vsel %vm293, %v294, %v205
        %v296 = vshrl.u32 %v295, 6
        %v297 = vand.u32 %v295, 63
        %v298 = vsub.s32 0, %v297
        %v299 = vsel %vm293, %v298, %v297
        %vm300 = vcmp.lt.s32.totalorder %v206, 0
        %v301 = vsub.s32 0, %v206
        %v302 = vsel %vm300, %v301, %v206
        %v303 = vshrl.u32 %v302, 6
        %v304 = vand.u32 %v302, 63
        %v305 = vsub.s32 0, %v304
        %v306 = vsel %vm300, %v305, %v304
        %vm307 = vcmp.lt.s32.totalorder %v207, 0
        %v308 = vsub.s32 0, %v207
        %v309 = vsel %vm307, %v308, %v207
        %v310 = vshrl.u32 %v309, 6
        %v311 = vand.u32 %v309, 63
        %v312 = vsub.s32 0, %v311
        %v313 = vsel %vm307, %v312, %v311
        %vm314 = vcmp.lt.s32.totalorder %v208, 0
        %v315 = vsub.s32 0, %v208
        %v316 = vsel %vm314, %v315, %v208
        %v317 = vshrl.u32 %v316, 6
        %v318 = vand.u32 %v316, 63
        %v319 = vsub.s32 0, %v318
        %v320 = vsel %vm314, %v319, %v318
        %vm321 = vcmp.ne.s32.totalorder %v215, 0
        %vm322 = vcmp.ne.s32.totalorder %v222, 0
        %vm323 = vcmp.ne.s32.totalorder %v229, 0
        %vm324 = vcmp.ne.s32.totalorder %v236, 0
        %vm325 = vcmp.ne.s32.totalorder %v243, 0
        %vm326 = vcmp.ne.s32.totalorder %v250, 0
        %vm327 = vcmp.ne.s32.totalorder %v257, 0
        %vm328 = vcmp.ne.s32.totalorder %v264, 0
        %vm329 = vcmp.ne.s32.totalorder %v271, 0
        %vm330 = vcmp.ne.s32.totalorder %v278, 0
        %vm331 = vcmp.ne.s32.totalorder %v285, 0
        %vm332 = vcmp.ne.s32.totalorder %v292, 0
        %vm333 = vcmp.ne.s32.totalorder %v299, 0
        %vm334 = vcmp.ne.s32.totalorder %v306, 0
        %vm335 = vcmp.ne.s32.totalorder %v313, 0
        %vm336 = vcmp.ne.s32.totalorder %v320, 0
        %vm337 = vcmp.lt.s32.totalorder %v215, 0
        %vm338 = vcmp.lt.s32.totalorder %v222, 0
        %vm339 = vcmp.lt.s32.totalorder %v229, 0
        %vm340 = vcmp.lt.s32.totalorder %v236, 0
        %vm341 = vcmp.lt.s32.totalorder %v243, 0
        %vm342 = vcmp.lt.s32.totalorder %v250, 0
        %vm343 = vcmp.lt.s32.totalorder %v257, 0
        %vm344 = vcmp.lt.s32.totalorder %v264, 0
        %vm345 = vcmp.lt.s32.totalorder %v271, 0
        %vm346 = vcmp.lt.s32.totalorder %v278, 0
        %vm347 = vcmp.lt.s32.totalorder %v285, 0
        %vm348 = vcmp.lt.s32.totalorder %v292, 0
        %vm349 = vcmp.lt.s32.totalorder %v299, 0
        %vm350 = vcmp.lt.s32.totalorder %v306, 0
        %vm351 = vcmp.lt.s32.totalorder %v313, 0
        %vm352 = vcmp.lt.s32.totalorder %v320, 0
        %vm353 = vmand %vm337, %vm321
        %vm354 = vmand %vm338, %vm322
        %vm355 = vmand %vm339, %vm323
        %vm356 = vmand %vm340, %vm324
        %vm357 = vmand %vm341, %vm325
        %vm358 = vmand %vm342, %vm326
        %vm359 = vmand %vm343, %vm327
        %vm360 = vmand %vm344, %vm328
        %vm361 = vmand %vm345, %vm329
        %vm362 = vmand %vm346, %vm330
        %vm363 = vmand %vm347, %vm331
        %vm364 = vmand %vm348, %vm332
        %vm365 = vmand %vm349, %vm333
        %vm366 = vmand %vm350, %vm334
        %vm367 = vmand %vm351, %vm335
        %vm368 = vmand %vm352, %vm336
        %v369 = vadd.s32 %v215, 64
        %v370 = vadd.s32 %v222, 64
        %v371 = vadd.s32 %v229, 64
        %v372 = vadd.s32 %v236, 64
        %v373 = vadd.s32 %v243, 64
        %v374 = vadd.s32 %v250, 64
        %v375 = vadd.s32 %v257, 64
        %v376 = vadd.s32 %v264, 64
        %v377 = vadd.s32 %v271, 64
        %v378 = vadd.s32 %v278, 64
        %v379 = vadd.s32 %v285, 64
        %v380 = vadd.s32 %v292, 64
        %v381 = vadd.s32 %v299, 64
        %v382 = vadd.s32 %v306, 64
        %v383 = vadd.s32 %v313, 64
        %v384 = vadd.s32 %v320, 64
        %v385 = vsel %vm353, %v369, %v215
        %v386 = vsel %vm354, %v370, %v222
        %v387 = vsel %vm355, %v371, %v229
        %v388 = vsel %vm356, %v372, %v236
        %v389 = vsel %vm357, %v373, %v243
        %v390 = vsel %vm358, %v374, %v250
        %v391 = vsel %vm359, %v375, %v257
        %v392 = vsel %vm360, %v376, %v264
        %v393 = vsel %vm361, %v377, %v271
        %v394 = vsel %vm362, %v378, %v278
        %v395 = vsel %vm363, %v379, %v285
        %v396 = vsel %vm364, %v380, %v292
        %v397 = vsel %vm365, %v381, %v299
        %v398 = vsel %vm366, %v382, %v306
        %v399 = vsel %vm367, %v383, %v313
        %v400 = vsel %vm368, %v384, %v320
        %vm401 = vcmp.eq.s32.totalorder %v385, 0
        %vm402 = vcmp.eq.s32.totalorder %v386, 0
        %vm403 = vcmp.eq.s32.totalorder %v387, 0
        %vm404 = vcmp.eq.s32.totalorder %v388, 0
        %vm405 = vcmp.eq.s32.totalorder %v389, 0
        %vm406 = vcmp.eq.s32.totalorder %v390, 0
        %vm407 = vcmp.eq.s32.totalorder %v391, 0
        %vm408 = vcmp.eq.s32.totalorder %v392, 0
        %vm409 = vcmp.eq.s32.totalorder %v393, 0
        %vm410 = vcmp.eq.s32.totalorder %v394, 0
        %vm411 = vcmp.eq.s32.totalorder %v395, 0
        %vm412 = vcmp.eq.s32.totalorder %v396, 0
        %vm413 = vcmp.eq.s32.totalorder %v397, 0
        %vm414 = vcmp.eq.s32.totalorder %v398, 0
        %vm415 = vcmp.eq.s32.totalorder %v399, 0
        %vm416 = vcmp.eq.s32.totalorder %v400, 0
        %vm417 = vcmp.eq.s32.totalorder %v385, 63
        %vm418 = vcmp.eq.s32.totalorder %v386, 63
        %vm419 = vcmp.eq.s32.totalorder %v387, 63
        %vm420 = vcmp.eq.s32.totalorder %v388, 63
        %vm421 = vcmp.eq.s32.totalorder %v389, 63
        %vm422 = vcmp.eq.s32.totalorder %v390, 63
        %vm423 = vcmp.eq.s32.totalorder %v391, 63
        %vm424 = vcmp.eq.s32.totalorder %v392, 63
        %vm425 = vcmp.eq.s32.totalorder %v393, 63
        %vm426 = vcmp.eq.s32.totalorder %v394, 63
        %vm427 = vcmp.eq.s32.totalorder %v395, 63
        %vm428 = vcmp.eq.s32.totalorder %v396, 63
        %vm429 = vcmp.eq.s32.totalorder %v397, 63
        %vm430 = vcmp.eq.s32.totalorder %v398, 63
        %vm431 = vcmp.eq.s32.totalorder %v399, 63
        %vm432 = vcmp.eq.s32.totalorder %v400, 63
        %v433 = vld [vmem:[%s1] sm:$0xf]
        %v434 = vld [vmem:[%s1 + $0x4] sm:$0xf]
        %v435 = vld [vmem:[%s1 + $0x8] sm:$0xf]
        %v436 = vld [vmem:[%s166] sm:$0xff]
        %v437 = vld [vmem:[%s166 + $0x8] sm:$0xff]
        %v438 = vld [vmem:[%s166 + $0x10] sm:$0xff]
        %v439 = vld [vmem:[%s166 + $0x18] sm:$0xff]
        %v440 = vld [vmem:[%s166 + $0x20] sm:$0xff]
        %v441 = vld [vmem:[%s166 + $0x28] sm:$0xff]
        %v442 = vld [vmem:[%s166 + $0x30] sm:$0xff]
        %v443 = vld [vmem:[%s166 + $0x38] sm:$0xff]
        %v444 = vld [vmem:[%s166 + $0x40] sm:$0xff]
        %v445 = vld [vmem:[%s166 + $0x48] sm:$0xff]
        %v446 = vld [vmem:[%s166 + $0x50] sm:$0xff]
        %v447 = vld [vmem:[%s166 + $0x58] sm:$0xff]
        %v448 = vld [vmem:[%s166 + $0x60] sm:$0xff]
        %v449 = vld [vmem:[%s166 + $0x68] sm:$0xff]
        %v450 = vld [vmem:[%s166 + $0x70] sm:$0xff]
        %v451 = vld [vmem:[%s166 + $0x78] sm:$0xff]
        %v452 = vld [vmem:[%s166 + $0x80] sm:$0xff]
        %v453 = vld [vmem:[%s166 + $0x88] sm:$0xff]
        %v454 = vld [vmem:[%s166 + $0x90] sm:$0xff]
        %v455 = vld [vmem:[%s166 + $0x98] sm:$0xff]
        %v456 = vld [vmem:[%s166 + $0xa0] sm:$0xff]
        %v457 = vld [vmem:[%s166 + $0xa8] sm:$0xff]
        %v458 = vld [vmem:[%s166 + $0xb0] sm:$0xff]
        %v459 = vld [vmem:[%s166 + $0xb8] sm:$0xff]
        %v460 = vld [vmem:[%s166 + $0xc0] sm:$0xff]
        %v461 = vld [vmem:[%s166 + $0xc8] sm:$0xff]
        %v462 = vld [vmem:[%s166 + $0xd0] sm:$0xff]
        %v463 = vld [vmem:[%s166 + $0xd8] sm:$0xff]
        %v464 = vld [vmem:[%s166 + $0xe0] sm:$0xff]
        %v465 = vld [vmem:[%s166 + $0xe8] sm:$0xff]
        %v466 = vld [vmem:[%s166 + $0xf0] sm:$0xff]
        %v467 = vld [vmem:[%s166 + $0xf8] sm:$0xff]
        %v468 = vld [vmem:[%s166 + $0x100] sm:$0xff]
        %v469 = vld [vmem:[%s166 + $0x108] sm:$0xff]
        %v470 = vld [vmem:[%s166 + $0x110] sm:$0xff]
        %v471 = vld [vmem:[%s166 + $0x118] sm:$0xff]
        %v472 = vld [vmem:[%s166 + $0x120] sm:$0xff]
        %v473 = vld [vmem:[%s166 + $0x128] sm:$0xff]
        %v474 = vld [vmem:[%s166 + $0x130] sm:$0xff]
        %v475 = vld [vmem:[%s166 + $0x138] sm:$0xff]
        %v476 = vld [vmem:[%s166 + $0x140] sm:$0xff]
        %v477 = vld [vmem:[%s166 + $0x148] sm:$0xff]
        %v478 = vld [vmem:[%s166 + $0x150] sm:$0xff]
        %v479 = vld [vmem:[%s166 + $0x158] sm:$0xff]
        %v480 = vld [vmem:[%s166 + $0x160] sm:$0xff]
        %v481 = vld [vmem:[%s166 + $0x168] sm:$0xff]
        %v482 = vld [vmem:[%s166 + $0x170] sm:$0xff]
        %v483 = vld [vmem:[%s166 + $0x178] sm:$0xff]
        %v484 = vld [vmem:[%s166 + $0x180] sm:$0xff]
        %v485 = vld [vmem:[%s166 + $0x188] sm:$0xff]
        %v486 = vld [vmem:[%s166 + $0x190] sm:$0xff]
        %v487 = vld [vmem:[%s166 + $0x198] sm:$0xff]
        %v488 = vld [vmem:[%s166 + $0x1a0] sm:$0xff]
        %v489 = vld [vmem:[%s166 + $0x1a8] sm:$0xff]
        %v490 = vld [vmem:[%s166 + $0x1b0] sm:$0xff]
        %v491 = vld [vmem:[%s166 + $0x1b8] sm:$0xff]
        %v492 = vld [vmem:[%s166 + $0x1c0] sm:$0xff]
        %v493 = vld [vmem:[%s166 + $0x1c8] sm:$0xff]
        %v494 = vld [vmem:[%s166 + $0x1d0] sm:$0xff]
        %v495 = vld [vmem:[%s166 + $0x1d8] sm:$0xff]
        %v496 = vld [vmem:[%s166 + $0x1e0] sm:$0xff]
        %v497 = vld [vmem:[%s166 + $0x1e8] sm:$0xff]
        %v498 = vld [vmem:[%s166 + $0x1f0] sm:$0xff]
        %v499 = vld [vmem:[%s166 + $0x1f8] sm:$0xff]
        %v503 = vunpack.c.l.b16 %v433
        %v504 = vunpack.c.l.b16 %v434
        %v505 = vunpack.c.l.b16 %v435
        %v506 = vpack.c.b16 %v504, %v503
        %v507 = vpack.c.b16 %v505, %v505
        %v572 = vunpack.c.l.b16 %v436
        %v573 = vunpack.c.h.b16 %v436
        %v574 = vunpack.c.l.b16 %v437
        %v575 = vunpack.c.h.b16 %v437
        %v576 = vunpack.c.l.b16 %v438
        %v577 = vunpack.c.h.b16 %v438
        %v578 = vunpack.c.l.b16 %v439
        %v579 = vunpack.c.h.b16 %v439
        %v580 = vunpack.c.l.b16 %v440
        %v581 = vunpack.c.h.b16 %v440
        %v582 = vunpack.c.l.b16 %v441
        %v583 = vunpack.c.h.b16 %v441
        %v584 = vunpack.c.l.b16 %v442
        %v585 = vunpack.c.h.b16 %v442
        %v586 = vunpack.c.l.b16 %v443
        %v587 = vunpack.c.h.b16 %v443
        %v588 = vunpack.c.l.b16 %v444
        %v589 = vunpack.c.h.b16 %v444
        %v590 = vunpack.c.l.b16 %v445
        %v591 = vunpack.c.h.b16 %v445
        %v592 = vunpack.c.l.b16 %v446
        %v593 = vunpack.c.h.b16 %v446
        %v594 = vunpack.c.l.b16 %v447
        %v595 = vunpack.c.h.b16 %v447
        %v596 = vunpack.c.l.b16 %v448
        %v597 = vunpack.c.h.b16 %v448
        %v598 = vunpack.c.l.b16 %v449
        %v599 = vunpack.c.h.b16 %v449
        %v600 = vunpack.c.l.b16 %v450
        %v601 = vunpack.c.h.b16 %v450
        %v602 = vunpack.c.l.b16 %v451
        %v603 = vunpack.c.h.b16 %v451
        %v604 = vunpack.c.l.b16 %v452
        %v605 = vunpack.c.h.b16 %v452
        %v606 = vunpack.c.l.b16 %v453
        %v607 = vunpack.c.h.b16 %v453
        %v608 = vunpack.c.l.b16 %v454
        %v609 = vunpack.c.h.b16 %v454
        %v610 = vunpack.c.l.b16 %v455
        %v611 = vunpack.c.h.b16 %v455
        %v612 = vunpack.c.l.b16 %v456
        %v613 = vunpack.c.h.b16 %v456
        %v614 = vunpack.c.l.b16 %v457
        %v615 = vunpack.c.h.b16 %v457
        %v616 = vunpack.c.l.b16 %v458
        %v617 = vunpack.c.h.b16 %v458
        %v618 = vunpack.c.l.b16 %v459
        %v619 = vunpack.c.h.b16 %v459
        %v620 = vunpack.c.l.b16 %v460
        %v621 = vunpack.c.h.b16 %v460
        %v622 = vunpack.c.l.b16 %v461
        %v623 = vunpack.c.h.b16 %v461
        %v624 = vunpack.c.l.b16 %v462
        %v625 = vunpack.c.h.b16 %v462
        %v626 = vunpack.c.l.b16 %v463
        %v627 = vunpack.c.h.b16 %v463
        %v628 = vunpack.c.l.b16 %v464
        %v629 = vunpack.c.h.b16 %v464
        %v630 = vunpack.c.l.b16 %v465
        %v631 = vunpack.c.h.b16 %v465
        %v632 = vunpack.c.l.b16 %v466
        %v633 = vunpack.c.h.b16 %v466
        %v634 = vunpack.c.l.b16 %v467
        %v635 = vunpack.c.h.b16 %v467
        %v636 = vunpack.c.l.b16 %v468
        %v637 = vunpack.c.h.b16 %v468
        %v638 = vunpack.c.l.b16 %v469
        %v639 = vunpack.c.h.b16 %v469
        %v640 = vunpack.c.l.b16 %v470
        %v641 = vunpack.c.h.b16 %v470
        %v642 = vunpack.c.l.b16 %v471
        %v643 = vunpack.c.h.b16 %v471
        %v644 = vunpack.c.l.b16 %v472
        %v645 = vunpack.c.h.b16 %v472
        %v646 = vunpack.c.l.b16 %v473
        %v647 = vunpack.c.h.b16 %v473
        %v648 = vunpack.c.l.b16 %v474
        %v649 = vunpack.c.h.b16 %v474
        %v650 = vunpack.c.l.b16 %v475
        %v651 = vunpack.c.h.b16 %v475
        %v652 = vunpack.c.l.b16 %v476
        %v653 = vunpack.c.h.b16 %v476
        %v654 = vunpack.c.l.b16 %v477
        %v655 = vunpack.c.h.b16 %v477
        %v656 = vunpack.c.l.b16 %v478
        %v657 = vunpack.c.h.b16 %v478
        %v658 = vunpack.c.l.b16 %v479
        %v659 = vunpack.c.h.b16 %v479
        %v660 = vunpack.c.l.b16 %v480
        %v661 = vunpack.c.h.b16 %v480
        %v662 = vunpack.c.l.b16 %v481
        %v663 = vunpack.c.h.b16 %v481
        %v664 = vunpack.c.l.b16 %v482
        %v665 = vunpack.c.h.b16 %v482
        %v666 = vunpack.c.l.b16 %v483
        %v667 = vunpack.c.h.b16 %v483
        %v668 = vunpack.c.l.b16 %v484
        %v669 = vunpack.c.h.b16 %v484
        %v670 = vunpack.c.l.b16 %v485
        %v671 = vunpack.c.h.b16 %v485
        %v672 = vunpack.c.l.b16 %v486
        %v673 = vunpack.c.h.b16 %v486
        %v674 = vunpack.c.l.b16 %v487
        %v675 = vunpack.c.h.b16 %v487
        %v676 = vunpack.c.l.b16 %v488
        %v677 = vunpack.c.h.b16 %v488
        %v678 = vunpack.c.l.b16 %v489
        %v679 = vunpack.c.h.b16 %v489
        %v680 = vunpack.c.l.b16 %v490
        %v681 = vunpack.c.h.b16 %v490
        %v682 = vunpack.c.l.b16 %v491
        %v683 = vunpack.c.h.b16 %v491
        %v684 = vunpack.c.l.b16 %v492
        %v685 = vunpack.c.h.b16 %v492
        %v686 = vunpack.c.l.b16 %v493
        %v687 = vunpack.c.h.b16 %v493
        %v688 = vunpack.c.l.b16 %v494
        %v689 = vunpack.c.h.b16 %v494
        %v690 = vunpack.c.l.b16 %v495
        %v691 = vunpack.c.h.b16 %v495
        %v692 = vunpack.c.l.b16 %v496
        %v693 = vunpack.c.h.b16 %v496
        %v694 = vunpack.c.l.b16 %v497
        %v695 = vunpack.c.h.b16 %v497
        %v696 = vunpack.c.l.b16 %v498
        %v697 = vunpack.c.h.b16 %v498
        %v698 = vunpack.c.l.b16 %v499
        %v699 = vunpack.c.h.b16 %v499
        %v700 = vpack.c.b16 %v588, %v572
        %v701 = vpack.c.b16 %v589, %v573
        %v702 = vpack.c.b16 %v590, %v574
        %v703 = vpack.c.b16 %v591, %v575
        %v704 = vpack.c.b16 %v592, %v576
        %v705 = vpack.c.b16 %v593, %v577
        %v706 = vpack.c.b16 %v594, %v578
        %v707 = vpack.c.b16 %v595, %v579
        %v708 = vpack.c.b16 %v596, %v580
        %v709 = vpack.c.b16 %v597, %v581
        %v710 = vpack.c.b16 %v598, %v582
        %v711 = vpack.c.b16 %v599, %v583
        %v712 = vpack.c.b16 %v600, %v584
        %v713 = vpack.c.b16 %v601, %v585
        %v714 = vpack.c.b16 %v602, %v586
        %v715 = vpack.c.b16 %v603, %v587
        %v716 = vpack.c.b16 %v620, %v604
        %v717 = vpack.c.b16 %v621, %v605
        %v718 = vpack.c.b16 %v622, %v606
        %v719 = vpack.c.b16 %v623, %v607
        %v720 = vpack.c.b16 %v624, %v608
        %v721 = vpack.c.b16 %v625, %v609
        %v722 = vpack.c.b16 %v626, %v610
        %v723 = vpack.c.b16 %v627, %v611
        %v724 = vpack.c.b16 %v628, %v612
        %v725 = vpack.c.b16 %v629, %v613
        %v726 = vpack.c.b16 %v630, %v614
        %v727 = vpack.c.b16 %v631, %v615
        %v728 = vpack.c.b16 %v632, %v616
        %v729 = vpack.c.b16 %v633, %v617
        %v730 = vpack.c.b16 %v634, %v618
        %v731 = vpack.c.b16 %v635, %v619
        %v732 = vpack.c.b16 %v652, %v636
        %v733 = vpack.c.b16 %v653, %v637
        %v734 = vpack.c.b16 %v654, %v638
        %v735 = vpack.c.b16 %v655, %v639
        %v736 = vpack.c.b16 %v656, %v640
        %v737 = vpack.c.b16 %v657, %v641
        %v738 = vpack.c.b16 %v658, %v642
        %v739 = vpack.c.b16 %v659, %v643
        %v740 = vpack.c.b16 %v660, %v644
        %v741 = vpack.c.b16 %v661, %v645
        %v742 = vpack.c.b16 %v662, %v646
        %v743 = vpack.c.b16 %v663, %v647
        %v744 = vpack.c.b16 %v664, %v648
        %v745 = vpack.c.b16 %v665, %v649
        %v746 = vpack.c.b16 %v666, %v650
        %v747 = vpack.c.b16 %v667, %v651
        %v748 = vpack.c.b16 %v684, %v668
        %v749 = vpack.c.b16 %v685, %v669
        %v750 = vpack.c.b16 %v686, %v670
        %v751 = vpack.c.b16 %v687, %v671
        %v752 = vpack.c.b16 %v688, %v672
        %v753 = vpack.c.b16 %v689, %v673
        %v754 = vpack.c.b16 %v690, %v674
        %v755 = vpack.c.b16 %v691, %v675
        %v756 = vpack.c.b16 %v692, %v676
        %v757 = vpack.c.b16 %v693, %v677
        %v758 = vpack.c.b16 %v694, %v678
        %v759 = vpack.c.b16 %v695, %v679
        %v760 = vpack.c.b16 %v696, %v680
        %v761 = vpack.c.b16 %v697, %v681
        %v762 = vpack.c.b16 %v698, %v682
        %v763 = vpack.c.b16 %v699, %v683
        %vm828 = vcmask 523264
        %v830 = vsel %vm828, %v506, 0
        %v833 = vsel %vm828, %v507, 0
        %835 = vmatprep.subr.bf16.mxu0 %v701
        %836 = vmatpush1.bf16.msra.mxu0 %v700
        %837 = vmatprep.subr.bf16.mxu0 %v717
        %838 = vmatpush1.bf16.msra.mxu0 %v716
        %839 = vmatprep.subr.bf16.mxu0 %v733
        %840 = vmatpush1.bf16.msra.mxu0 %v732
        %841 = vmatprep.subr.bf16.mxu0 %v749
        %842 = vmatpush1.bf16.msra.mxu0 %v748
        %843 = vmatprep.subr.bf16.mxu0 0
        %844 = vmatpush1.bf16.msra.mxu0 0
        %845 = vmatprep.subr.bf16.mxu0 0
        %846 = vmatpush1.bf16.msra.mxu0 0
        %847 = vmatprep.subr.bf16.mxu0 0
        %848 = vmatpush1.bf16.msra.mxu0 0
        %849 = vmatprep.subr.bf16.mxu0 0
        %850 = vmatpush1.bf16.msra.mxu0 0
        %851 = vmatprep.subr.bf16.mxu0 0
        %852 = vmatpush1.bf16.msra.mxu0 0
        %853 = vmatprep.subr.bf16.mxu0 0
        %854 = vmatpush1.bf16.msra.mxu0 0
        %855 = vmatprep.subr.bf16.mxu0 0
        %856 = vmatpush1.bf16.msra.mxu0 0
        %857 = vmatprep.subr.bf16.mxu0 0
        %858 = vmatpush1.bf16.msra.mxu0 0
        %859 = vmatprep.subr.bf16.mxu0 0
        %860 = vmatpush1.bf16.msra.mxu0 0
        %861 = vmatprep.subr.bf16.mxu0 0
        %862 = vmatpush1.bf16.msra.mxu0 0
        %863 = vmatprep.subr.bf16.mxu0 0
        %864 = vmatpush1.bf16.msra.mxu0 0
        %865 = vmatprep.subr.bf16.mxu0 0
        %866 = vmatpush1.bf16.msra.mxu0 0
        %867 = vmatprep.mubr.bf16.mxu0 0
        %868 = vmatmul.mubr.bf16.gmra.mrb[0].mxu0 %v830
        %v869 = vpop.f32.mrb[0].mxu0
        %v870 = vadd.f32 0.0, %v869
        %v871 = vpop.f32.mrb[0].mxu0
        %v872 = vadd.f32 0.0, %v871
        %v873 = vpop.f32.mrb[0].mxu0
        %v874 = vadd.f32 0.0, %v873
        %v875 = vpop.f32.mrb[0].mxu0
        %v876 = vadd.f32 0.0, %v875
        %877 = vmatprep.mubr.bf16.mxu0 0
        %878 = vmatmul.mubr.bf16.gmra.mrb[0].mxu0 %v833
        %v879 = vpop.f32.mrb[0].mxu0
        %v880 = vadd.f32 0.0, %v879
        %v881 = vpop.f32.mrb[0].mxu0
        %v882 = vadd.f32 0.0, %v881
        %v883 = vpop.f32.mrb[0].mxu0
        %v884 = vpop.f32.mrb[0].mxu0
        %885 = vdwg.mxu0
        %886 = vmatprep.subr.bf16.mxu0 %v703
        %887 = vmatpush1.bf16.msra.mxu0 %v702
        %888 = vmatprep.subr.bf16.mxu0 %v719
        %889 = vmatpush1.bf16.msra.mxu0 %v718
        %890 = vmatprep.subr.bf16.mxu0 %v735
        %891 = vmatpush1.bf16.msra.mxu0 %v734
        %892 = vmatprep.subr.bf16.mxu0 %v751
        %893 = vmatpush1.bf16.msra.mxu0 %v750
        %894 = vmatprep.subr.bf16.mxu0 0
        %895 = vmatpush1.bf16.msra.mxu0 0
        %896 = vmatprep.subr.bf16.mxu0 0
        %897 = vmatpush1.bf16.msra.mxu0 0
        %898 = vmatprep.subr.bf16.mxu0 0
        %899 = vmatpush1.bf16.msra.mxu0 0
        %900 = vmatprep.subr.bf16.mxu0 0
        %901 = vmatpush1.bf16.msra.mxu0 0
        %902 = vmatprep.subr.bf16.mxu0 0
        %903 = vmatpush1.bf16.msra.mxu0 0
        %904 = vmatprep.subr.bf16.mxu0 0
        %905 = vmatpush1.bf16.msra.mxu0 0
        %906 = vmatprep.subr.bf16.mxu0 0
        %907 = vmatpush1.bf16.msra.mxu0 0
        %908 = vmatprep.subr.bf16.mxu0 0
        %909 = vmatpush1.bf16.msra.mxu0 0
        %910 = vmatprep.subr.bf16.mxu0 0
        %911 = vmatpush1.bf16.msra.mxu0 0
        %912 = vmatprep.subr.bf16.mxu0 0
        %913 = vmatpush1.bf16.msra.mxu0 0
        %914 = vmatprep.subr.bf16.mxu0 0
        %915 = vmatpush1.bf16.msra.mxu0 0
        %916 = vmatprep.subr.bf16.mxu0 0
        %917 = vmatpush1.bf16.msra.mxu0 0
        %918 = vmatprep.mubr.bf16.mxu0 0
        %919 = vmatmul.mubr.bf16.gmra.mrb[0].mxu0 %v830
        %v920 = vpop.f32.mrb[0].mxu0
        %v921 = vadd.f32 0.0, %v920
        %v922 = vpop.f32.mrb[0].mxu0
        %v923 = vadd.f32 0.0, %v922
        %v924 = vpop.f32.mrb[0].mxu0
        %v925 = vadd.f32 0.0, %v924
        %v926 = vpop.f32.mrb[0].mxu0
        %v927 = vadd.f32 0.0, %v926
        %928 = vmatprep.mubr.bf16.mxu0 0
        %929 = vmatmul.mubr.bf16.gmra.mrb[0].mxu0 %v833
        %v930 = vpop.f32.mrb[0].mxu0
        %v931 = vadd.f32 0.0, %v930
        %v932 = vpop.f32.mrb[0].mxu0
        %v933 = vadd.f32 0.0, %v932
        %v934 = vpop.f32.mrb[0].mxu0
        %v935 = vpop.f32.mrb[0].mxu0
        %936 = vdwg.mxu0
        %937 = vmatprep.subr.bf16.mxu0 %v705
        %938 = vmatpush1.bf16.msra.mxu0 %v704
        %939 = vmatprep.subr.bf16.mxu0 %v721
        %940 = vmatpush1.bf16.msra.mxu0 %v720
        %941 = vmatprep.subr.bf16.mxu0 %v737
        %942 = vmatpush1.bf16.msra.mxu0 %v736
        %943 = vmatprep.subr.bf16.mxu0 %v753
        %944 = vmatpush1.bf16.msra.mxu0 %v752
        %945 = vmatprep.subr.bf16.mxu0 0
        %946 = vmatpush1.bf16.msra.mxu0 0
        %947 = vmatprep.subr.bf16.mxu0 0
        %948 = vmatpush1.bf16.msra.mxu0 0
        %949 = vmatprep.subr.bf16.mxu0 0
        %950 = vmatpush1.bf16.msra.mxu0 0
        %951 = vmatprep.subr.bf16.mxu0 0
        %952 = vmatpush1.bf16.msra.mxu0 0
        %953 = vmatprep.subr.bf16.mxu0 0
        %954 = vmatpush1.bf16.msra.mxu0 0
        %955 = vmatprep.subr.bf16.mxu0 0
        %956 = vmatpush1.bf16.msra.mxu0 0
        %957 = vmatprep.subr.bf16.mxu0 0
        %958 = vmatpush1.bf16.msra.mxu0 0
        %959 = vmatprep.subr.bf16.mxu0 0
        %960 = vmatpush1.bf16.msra.mxu0 0
        %961 = vmatprep.subr.bf16.mxu0 0
        %962 = vmatpush1.bf16.msra.mxu0 0
        %963 = vmatprep.subr.bf16.mxu0 0
        %964 = vmatpush1.bf16.msra.mxu0 0
        %965 = vmatprep.subr.bf16.mxu0 0
        %966 = vmatpush1.bf16.msra.mxu0 0
        %967 = vmatprep.subr.bf16.mxu0 0
        %968 = vmatpush1.bf16.msra.mxu0 0
        %969 = vmatprep.mubr.bf16.mxu0 0
        %970 = vmatmul.mubr.bf16.gmra.mrb[0].mxu0 %v830
        %v971 = vpop.f32.mrb[0].mxu0
        %v972 = vadd.f32 0.0, %v971
        %v973 = vpop.f32.mrb[0].mxu0
        %v974 = vadd.f32 0.0, %v973
        %v975 = vpop.f32.mrb[0].mxu0
        %v976 = vadd.f32 0.0, %v975
        %v977 = vpop.f32.mrb[0].mxu0
        %v978 = vadd.f32 0.0, %v977
        %979 = vmatprep.mubr.bf16.mxu0 0
        %980 = vmatmul.mubr.bf16.gmra.mrb[0].mxu0 %v833
        %v981 = vpop.f32.mrb[0].mxu0
        %v982 = vadd.f32 0.0, %v981
        %v983 = vpop.f32.mrb[0].mxu0
        %v984 = vadd.f32 0.0, %v983
        %v985 = vpop.f32.mrb[0].mxu0
        %v986 = vpop.f32.mrb[0].mxu0
        %987 = vdwg.mxu0
        %988 = vmatprep.subr.bf16.mxu0 %v707
        %989 = vmatpush1.bf16.msra.mxu0 %v706
        %990 = vmatprep.subr.bf16.mxu0 %v723
        %991 = vmatpush1.bf16.msra.mxu0 %v722
        %992 = vmatprep.subr.bf16.mxu0 %v739
        %993 = vmatpush1.bf16.msra.mxu0 %v738
        %994 = vmatprep.subr.bf16.mxu0 %v755
        %995 = vmatpush1.bf16.msra.mxu0 %v754
        %996 = vmatprep.subr.bf16.mxu0 0
        %997 = vmatpush1.bf16.msra.mxu0 0
        %998 = vmatprep.subr.bf16.mxu0 0
        %999 = vmatpush1.bf16.msra.mxu0 0
        %1000 = vmatprep.subr.bf16.mxu0 0
        %1001 = vmatpush1.bf16.msra.mxu0 0
        %1002 = vmatprep.subr.bf16.mxu0 0
        %1003 = vmatpush1.bf16.msra.mxu0 0
        %1004 = vmatprep.subr.bf16.mxu0 0
        %1005 = vmatpush1.bf16.msra.mxu0 0
        %1006 = vmatprep.subr.bf16.mxu0 0
        %1007 = vmatpush1.bf16.msra.mxu0 0
        %1008 = vmatprep.subr.bf16.mxu0 0
        %1009 = vmatpush1.bf16.msra.mxu0 0
        %1010 = vmatprep.subr.bf16.mxu0 0
        %1011 = vmatpush1.bf16.msra.mxu0 0
        %1012 = vmatprep.subr.bf16.mxu0 0
        %1013 = vmatpush1.bf16.msra.mxu0 0
        %1014 = vmatprep.subr.bf16.mxu0 0
        %1015 = vmatpush1.bf16.msra.mxu0 0
        %1016 = vmatprep.subr.bf16.mxu0 0
        %1017 = vmatpush1.bf16.msra.mxu0 0
        %1018 = vmatprep.subr.bf16.mxu0 0
        %1019 = vmatpush1.bf16.msra.mxu0 0
        %1020 = vmatprep.mubr.bf16.mxu0 0
        %1021 = vmatmul.mubr.bf16.gmra.mrb[0].mxu0 %v830
        %v1022 = vpop.f32.mrb[0].mxu0
        %v1023 = vadd.f32 0.0, %v1022
        %v1024 = vpop.f32.mrb[0].mxu0
        %v1025 = vadd.f32 0.0, %v1024
        %v1026 = vpop.f32.mrb[0].mxu0
        %v1027 = vadd.f32 0.0, %v1026
        %v1028 = vpop.f32.mrb[0].mxu0
        %v1029 = vadd.f32 0.0, %v1028
        %1030 = vmatprep.mubr.bf16.mxu0 0
        %1031 = vmatmul.mubr.bf16.gmra.mrb[0].mxu0 %v833
        %v1032 = vpop.f32.mrb[0].mxu0
        %v1033 = vadd.f32 0.0, %v1032
        %v1034 = vpop.f32.mrb[0].mxu0
        %v1035 = vadd.f32 0.0, %v1034
        %v1036 = vpop.f32.mrb[0].mxu0
        %v1037 = vpop.f32.mrb[0].mxu0
        %1038 = vdwg.mxu0
        %1039 = vmatprep.subr.bf16.mxu0 %v709
        %1040 = vmatpush1.bf16.msra.mxu0 %v708
        %1041 = vmatprep.subr.bf16.mxu0 %v725
        %1042 = vmatpush1.bf16.msra.mxu0 %v724
        %1043 = vmatprep.subr.bf16.mxu0 %v741
        %1044 = vmatpush1.bf16.msra.mxu0 %v740
        %1045 = vmatprep.subr.bf16.mxu0 %v757
        %1046 = vmatpush1.bf16.msra.mxu0 %v756
        %1047 = vmatprep.subr.bf16.mxu0 0
        %1048 = vmatpush1.bf16.msra.mxu0 0
        %1049 = vmatprep.subr.bf16.mxu0 0
        %1050 = vmatpush1.bf16.msra.mxu0 0
        %1051 = vmatprep.subr.bf16.mxu0 0
        %1052 = vmatpush1.bf16.msra.mxu0 0
        %1053 = vmatprep.subr.bf16.mxu0 0
        %1054 = vmatpush1.bf16.msra.mxu0 0
        %1055 = vmatprep.subr.bf16.mxu0 0
        %1056 = vmatpush1.bf16.msra.mxu0 0
        %1057 = vmatprep.subr.bf16.mxu0 0
        %1058 = vmatpush1.bf16.msra.mxu0 0
        %1059 = vmatprep.subr.bf16.mxu0 0
        %1060 = vmatpush1.bf16.msra.mxu0 0
        %1061 = vmatprep.subr.bf16.mxu0 0
        %1062 = vmatpush1.bf16.msra.mxu0 0
        %1063 = vmatprep.subr.bf16.mxu0 0
        %1064 = vmatpush1.bf16.msra.mxu0 0
        %1065 = vmatprep.subr.bf16.mxu0 0
        %1066 = vmatpush1.bf16.msra.mxu0 0
        %1067 = vmatprep.subr.bf16.mxu0 0
        %1068 = vmatpush1.bf16.msra.mxu0 0
        %1069 = vmatprep.subr.bf16.mxu0 0
        %1070 = vmatpush1.bf16.msra.mxu0 0
        %1071 = vmatprep.mubr.bf16.mxu0 0
        %1072 = vmatmul.mubr.bf16.gmra.mrb[0].mxu0 %v830
        %v1073 = vpop.f32.mrb[0].mxu0
        %v1074 = vadd.f32 0.0, %v1073
        %v1075 = vpop.f32.mrb[0].mxu0
        %v1076 = vadd.f32 0.0, %v1075
        %v1077 = vpop.f32.mrb[0].mxu0
        %v1078 = vadd.f32 0.0, %v1077
        %v1079 = vpop.f32.mrb[0].mxu0
        %v1080 = vadd.f32 0.0, %v1079
        %1081 = vmatprep.mubr.bf16.mxu0 0
        %1082 = vmatmul.mubr.bf16.gmra.mrb[0].mxu0 %v833
        %v1083 = vpop.f32.mrb[0].mxu0
        %v1084 = vadd.f32 0.0, %v1083
        %v1085 = vpop.f32.mrb[0].mxu0
        %v1086 = vadd.f32 0.0, %v1085
        %v1087 = vpop.f32.mrb[0].mxu0
        %v1088 = vpop.f32.mrb[0].mxu0
        %1089 = vdwg.mxu0
        %1090 = vmatprep.subr.bf16.mxu0 %v711
        %1091 = vmatpush1.bf16.msra.mxu0 %v710
        %1092 = vmatprep.subr.bf16.mxu0 %v727
        %1093 = vmatpush1.bf16.msra.mxu0 %v726
        %1094 = vmatprep.subr.bf16.mxu0 %v743
        %1095 = vmatpush1.bf16.msra.mxu0 %v742
        %1096 = vmatprep.subr.bf16.mxu0 %v759
        %1097 = vmatpush1.bf16.msra.mxu0 %v758
        %1098 = vmatprep.subr.bf16.mxu0 0
        %1099 = vmatpush1.bf16.msra.mxu0 0
        %1100 = vmatprep.subr.bf16.mxu0 0
        %1101 = vmatpush1.bf16.msra.mxu0 0
        %1102 = vmatprep.subr.bf16.mxu0 0
        %1103 = vmatpush1.bf16.msra.mxu0 0
        %1104 = vmatprep.subr.bf16.mxu0 0
        %1105 = vmatpush1.bf16.msra.mxu0 0
        %1106 = vmatprep.subr.bf16.mxu0 0
        %1107 = vmatpush1.bf16.msra.mxu0 0
        %1108 = vmatprep.subr.bf16.mxu0 0
        %1109 = vmatpush1.bf16.msra.mxu0 0
        %1110 = vmatprep.subr.bf16.mxu0 0
        %1111 = vmatpush1.bf16.msra.mxu0 0
        %1112 = vmatprep.subr.bf16.mxu0 0
        %1113 = vmatpush1.bf16.msra.mxu0 0
        %1114 = vmatprep.subr.bf16.mxu0 0
        %1115 = vmatpush1.bf16.msra.mxu0 0
        %1116 = vmatprep.subr.bf16.mxu0 0
        %1117 = vmatpush1.bf16.msra.mxu0 0
        %1118 = vmatprep.subr.bf16.mxu0 0
        %1119 = vmatpush1.bf16.msra.mxu0 0
        %1120 = vmatprep.subr.bf16.mxu0 0
        %1121 = vmatpush1.bf16.msra.mxu0 0
        %1122 = vmatprep.mubr.bf16.mxu0 0
        %1123 = vmatmul.mubr.bf16.gmra.mrb[0].mxu0 %v830
        %v1124 = vpop.f32.mrb[0].mxu0
        %v1125 = vadd.f32 0.0, %v1124
        %v1126 = vpop.f32.mrb[0].mxu0
        %v1127 = vadd.f32 0.0, %v1126
        %v1128 = vpop.f32.mrb[0].mxu0
        %v1129 = vadd.f32 0.0, %v1128
        %v1130 = vpop.f32.mrb[0].mxu0
        %v1131 = vadd.f32 0.0, %v1130
        %1132 = vmatprep.mubr.bf16.mxu0 0
        %1133 = vmatmul.mubr.bf16.gmra.mrb[0].mxu0 %v833
        %v1134 = vpop.f32.mrb[0].mxu0
        %v1135 = vadd.f32 0.0, %v1134
        %v1136 = vpop.f32.mrb[0].mxu0
        %v1137 = vadd.f32 0.0, %v1136
        %v1138 = vpop.f32.mrb[0].mxu0
        %v1139 = vpop.f32.mrb[0].mxu0
        %1140 = vdwg.mxu0
        %1141 = vmatprep.subr.bf16.mxu0 %v713
        %1142 = vmatpush1.bf16.msra.mxu0 %v712
        %1143 = vmatprep.subr.bf16.mxu0 %v729
        %1144 = vmatpush1.bf16.msra.mxu0 %v728
        %1145 = vmatprep.subr.bf16.mxu0 %v745
        %1146 = vmatpush1.bf16.msra.mxu0 %v744
        %1147 = vmatprep.subr.bf16.mxu0 %v761
        %1148 = vmatpush1.bf16.msra.mxu0 %v760
        %1149 = vmatprep.subr.bf16.mxu0 0
        %1150 = vmatpush1.bf16.msra.mxu0 0
        %1151 = vmatprep.subr.bf16.mxu0 0
        %1152 = vmatpush1.bf16.msra.mxu0 0
        %1153 = vmatprep.subr.bf16.mxu0 0
        %1154 = vmatpush1.bf16.msra.mxu0 0
        %1155 = vmatprep.subr.bf16.mxu0 0
        %1156 = vmatpush1.bf16.msra.mxu0 0
        %1157 = vmatprep.subr.bf16.mxu0 0
        %1158 = vmatpush1.bf16.msra.mxu0 0
        %1159 = vmatprep.subr.bf16.mxu0 0
        %1160 = vmatpush1.bf16.msra.mxu0 0
        %1161 = vmatprep.subr.bf16.mxu0 0
        %1162 = vmatpush1.bf16.msra.mxu0 0
        %1163 = vmatprep.subr.bf16.mxu0 0
        %1164 = vmatpush1.bf16.msra.mxu0 0
        %1165 = vmatprep.subr.bf16.mxu0 0
        %1166 = vmatpush1.bf16.msra.mxu0 0
        %1167 = vmatprep.subr.bf16.mxu0 0
        %1168 = vmatpush1.bf16.msra.mxu0 0
        %1169 = vmatprep.subr.bf16.mxu0 0
        %1170 = vmatpush1.bf16.msra.mxu0 0
        %1171 = vmatprep.subr.bf16.mxu0 0
        %1172 = vmatpush1.bf16.msra.mxu0 0
        %1173 = vmatprep.mubr.bf16.mxu0 0
        %1174 = vmatmul.mubr.bf16.gmra.mrb[0].mxu0 %v830
        %v1175 = vpop.f32.mrb[0].mxu0
        %v1176 = vadd.f32 0.0, %v1175
        %v1177 = vpop.f32.mrb[0].mxu0
        %v1178 = vadd.f32 0.0, %v1177
        %v1179 = vpop.f32.mrb[0].mxu0
        %v1180 = vadd.f32 0.0, %v1179
        %v1181 = vpop.f32.mrb[0].mxu0
        %v1182 = vadd.f32 0.0, %v1181
        %1183 = vmatprep.mubr.bf16.mxu0 0
        %1184 = vmatmul.mubr.bf16.gmra.mrb[0].mxu0 %v833
        %v1185 = vpop.f32.mrb[0].mxu0
        %v1186 = vadd.f32 0.0, %v1185
        %v1187 = vpop.f32.mrb[0].mxu0
        %v1188 = vadd.f32 0.0, %v1187
        %v1189 = vpop.f32.mrb[0].mxu0
        %v1190 = vpop.f32.mrb[0].mxu0
        %1191 = vdwg.mxu0
        %1192 = vmatprep.subr.bf16.mxu0 %v715
        %1193 = vmatpush1.bf16.msra.mxu0 %v714
        %1194 = vmatprep.subr.bf16.mxu0 %v731
        %1195 = vmatpush1.bf16.msra.mxu0 %v730
        %1196 = vmatprep.subr.bf16.mxu0 %v747
        %1197 = vmatpush1.bf16.msra.mxu0 %v746
        %1198 = vmatprep.subr.bf16.mxu0 %v763
        %1199 = vmatpush1.bf16.msra.mxu0 %v762
        %1200 = vmatprep.subr.bf16.mxu0 0
        %1201 = vmatpush1.bf16.msra.mxu0 0
        %1202 = vmatprep.subr.bf16.mxu0 0
        %1203 = vmatpush1.bf16.msra.mxu0 0
        %1204 = vmatprep.subr.bf16.mxu0 0
        %1205 = vmatpush1.bf16.msra.mxu0 0
        %1206 = vmatprep.subr.bf16.mxu0 0
        %1207 = vmatpush1.bf16.msra.mxu0 0
        %1208 = vmatprep.subr.bf16.mxu0 0
        %1209 = vmatpush1.bf16.msra.mxu0 0
        %1210 = vmatprep.subr.bf16.mxu0 0
        %1211 = vmatpush1.bf16.msra.mxu0 0
        %1212 = vmatprep.subr.bf16.mxu0 0
        %1213 = vmatpush1.bf16.msra.mxu0 0
        %1214 = vmatprep.subr.bf16.mxu0 0
        %1215 = vmatpush1.bf16.msra.mxu0 0
        %1216 = vmatprep.subr.bf16.mxu0 0
        %1217 = vmatpush1.bf16.msra.mxu0 0
        %1218 = vmatprep.subr.bf16.mxu0 0
        %1219 = vmatpush1.bf16.msra.mxu0 0
        %1220 = vmatprep.subr.bf16.mxu0 0
        %1221 = vmatpush1.bf16.msra.mxu0 0
        %1222 = vmatprep.subr.bf16.mxu0 0
        %1223 = vmatpush1.bf16.msra.mxu0 0
        %1224 = vmatprep.mubr.bf16.mxu0 0
        %1225 = vmatmul.mubr.bf16.gmra.mrb[0].mxu0 %v830
        %v1226 = vpop.f32.mrb[0].mxu0
        %v1227 = vadd.f32 0.0, %v1226
        %v1228 = vpop.f32.mrb[0].mxu0
        %v1229 = vadd.f32 0.0, %v1228
        %v1230 = vpop.f32.mrb[0].mxu0
        %v1231 = vadd.f32 0.0, %v1230
        %v1232 = vpop.f32.mrb[0].mxu0
        %v1233 = vadd.f32 0.0, %v1232
        %1234 = vmatprep.mubr.bf16.mxu0 0
        %1235 = vmatmul.mubr.bf16.gmra.mrb[0].mxu0 %v833
        %v1236 = vpop.f32.mrb[0].mxu0
        %v1237 = vadd.f32 0.0, %v1236
        %v1238 = vpop.f32.mrb[0].mxu0
        %v1239 = vadd.f32 0.0, %v1238
        %v1240 = vpop.f32.mrb[0].mxu0
        %v1241 = vpop.f32.mrb[0].mxu0
        %1242 = vdwg.mxu0
        %1243 = vrot.lane.b32.xlu0 %v870, 1
        %v1244 = vpop.permute.xlu0 %1243
        %1245 = vrot.lane.b32.xlu0 %v872, 1
        %v1246 = vpop.permute.xlu0 %1245
        %1247 = vrot.lane.b32.xlu0 %v921, 1
        %v1248 = vpop.permute.xlu0 %1247
        %1249 = vrot.lane.b32.xlu0 %v923, 1
        %v1250 = vpop.permute.xlu0 %1249
        %1251 = vrot.lane.b32.xlu0 %v972, 1
        %v1252 = vpop.permute.xlu0 %1251
        %1253 = vrot.lane.b32.xlu0 %v974, 1
        %v1254 = vpop.permute.xlu0 %1253
        %1255 = vrot.lane.b32.xlu0 %v1023, 1
        %v1256 = vpop.permute.xlu0 %1255
        %1257 = vrot.lane.b32.xlu0 %v1025, 1
        %v1258 = vpop.permute.xlu0 %1257
        %1259 = vrot.lane.b32.xlu0 %v1074, 1
        %v1260 = vpop.permute.xlu0 %1259
        %1261 = vrot.lane.b32.xlu0 %v1076, 1
        %v1262 = vpop.permute.xlu0 %1261
        %1263 = vrot.lane.b32.xlu0 %v1125, 1
        %v1264 = vpop.permute.xlu0 %1263
        %1265 = vrot.lane.b32.xlu0 %v1127, 1
        %v1266 = vpop.permute.xlu0 %1265
        %1267 = vrot.lane.b32.xlu0 %v1176, 1
        %v1268 = vpop.permute.xlu0 %1267
        %1269 = vrot.lane.b32.xlu0 %v1178, 1
        %v1270 = vpop.permute.xlu0 %1269
        %1271 = vrot.lane.b32.xlu0 %v1227, 1
        %v1272 = vpop.permute.xlu0 %1271
        %1273 = vrot.lane.b32.xlu0 %v1229, 1
        %v1274 = vpop.permute.xlu0 %1273
        %vm1275 = vcmp.lt.s32.totalorder %v193, 1
        %v1276 = vsel %vm1275, %v1272, %v1274
        %v1277 = vsel %vm1275, %v1270, %v1272
        %v1278 = vsel %vm1275, %v1268, %v1270
        %v1279 = vsel %vm1275, %v1266, %v1268
        %v1280 = vsel %vm1275, %v1264, %v1266
        %v1281 = vsel %vm1275, %v1262, %v1264
        %v1282 = vsel %vm1275, %v1260, %v1262
        %v1283 = vsel %vm1275, %v1258, %v1260
        %v1284 = vsel %vm1275, %v1256, %v1258
        %v1285 = vsel %vm1275, %v1254, %v1256
        %v1286 = vsel %vm1275, %v1252, %v1254
        %v1287 = vsel %vm1275, %v1250, %v1252
        %v1288 = vsel %vm1275, %v1248, %v1250
        %v1289 = vsel %vm1275, %v1246, %v1248
        %v1290 = vsel %vm1275, %v1244, %v1246
        %v1291 = vsel %vm1275, %v1274, %v1244
        %v1292 = vsel %vm401, 1, 0
        %v1293 = vsel %vm402, 1, 0
        %v1294 = vsel %vm403, 1, 0
        %v1295 = vsel %vm404, 1, 0
        %v1296 = vsel %vm405, 1, 0
        %v1297 = vsel %vm406, 1, 0
        %v1298 = vsel %vm407, 1, 0
        %v1299 = vsel %vm408, 1, 0
        %v1300 = vsel %vm409, 1, 0
        %v1301 = vsel %vm410, 1, 0
        %v1302 = vsel %vm411, 1, 0
        %v1303 = vsel %vm412, 1, 0
        %v1304 = vsel %vm413, 1, 0
        %v1305 = vsel %vm414, 1, 0
        %v1306 = vsel %vm415, 1, 0
        %v1307 = vsel %vm416, 1, 0
        %vm1308 = vcmp.eq.s32.totalorder %v1292, 1
        %vm1309 = vcmp.eq.s32.totalorder %v1293, 1
        %vm1310 = vcmp.eq.s32.totalorder %v1294, 1
        %vm1311 = vcmp.eq.s32.totalorder %v1295, 1
        %vm1312 = vcmp.eq.s32.totalorder %v1296, 1
        %vm1313 = vcmp.eq.s32.totalorder %v1297, 1
        %vm1314 = vcmp.eq.s32.totalorder %v1298, 1
        %vm1315 = vcmp.eq.s32.totalorder %v1299, 1
        %vm1316 = vcmp.eq.s32.totalorder %v1300, 1
        %vm1317 = vcmp.eq.s32.totalorder %v1301, 1
        %vm1318 = vcmp.eq.s32.totalorder %v1302, 1
        %vm1319 = vcmp.eq.s32.totalorder %v1303, 1
        %vm1320 = vcmp.eq.s32.totalorder %v1304, 1
        %vm1321 = vcmp.eq.s32.totalorder %v1305, 1
        %vm1322 = vcmp.eq.s32.totalorder %v1306, 1
        %vm1323 = vcmp.eq.s32.totalorder %v1307, 1
        %v1324 = vsel %vm1308, 0.0, %v1291
        %v1325 = vsel %vm1309, 0.0, %v1290
        %v1326 = vsel %vm1310, 0.0, %v1289
        %v1327 = vsel %vm1311, 0.0, %v1288
        %v1328 = vsel %vm1312, 0.0, %v1287
        %v1329 = vsel %vm1313, 0.0, %v1286
        %v1330 = vsel %vm1314, 0.0, %v1285
        %v1331 = vsel %vm1315, 0.0, %v1284
        %v1332 = vsel %vm1316, 0.0, %v1283
        %v1333 = vsel %vm1317, 0.0, %v1282
        %v1334 = vsel %vm1318, 0.0, %v1281
        %v1335 = vsel %vm1319, 0.0, %v1280
        %v1336 = vsel %vm1320, 0.0, %v1279
        %v1337 = vsel %vm1321, 0.0, %v1278
        %v1338 = vsel %vm1322, 0.0, %v1277
        %v1339 = vsel %vm1323, 0.0, %v1276
        %v1340 = vadd.f32 %v1324, %v874
        %v1341 = vadd.f32 %v1325, %v876
        %v1342 = vadd.f32 %v1326, %v925
        %v1343 = vadd.f32 %v1327, %v927
        %v1344 = vadd.f32 %v1328, %v976
        %v1345 = vadd.f32 %v1329, %v978
        %v1346 = vadd.f32 %v1330, %v1027
        %v1347 = vadd.f32 %v1331, %v1029
        %v1348 = vadd.f32 %v1332, %v1078
        %v1349 = vadd.f32 %v1333, %v1080
        %v1350 = vadd.f32 %v1334, %v1129
        %v1351 = vadd.f32 %v1335, %v1131
        %v1352 = vadd.f32 %v1336, %v1180
        %v1353 = vadd.f32 %v1337, %v1182
        %v1354 = vadd.f32 %v1338, %v1231
        %v1355 = vadd.f32 %v1339, %v1233
        %1356 = vrot.lane.b32.xlu0 %v880, 127
        %v1357 = vpop.permute.xlu0 %1356
        %1358 = vrot.lane.b32.xlu0 %v882, 127
        %v1359 = vpop.permute.xlu0 %1358
        %1360 = vrot.lane.b32.xlu0 %v931, 127
        %v1361 = vpop.permute.xlu0 %1360
        %1362 = vrot.lane.b32.xlu0 %v933, 127
        %v1363 = vpop.permute.xlu0 %1362
        %1364 = vrot.lane.b32.xlu0 %v982, 127
        %v1365 = vpop.permute.xlu0 %1364
        %1366 = vrot.lane.b32.xlu0 %v984, 127
        %v1367 = vpop.permute.xlu0 %1366
        %1368 = vrot.lane.b32.xlu0 %v1033, 127
        %v1369 = vpop.permute.xlu0 %1368
        %1370 = vrot.lane.b32.xlu0 %v1035, 127
        %v1371 = vpop.permute.xlu0 %1370
        %1372 = vrot.lane.b32.xlu0 %v1084, 127
        %v1373 = vpop.permute.xlu0 %1372
        %1374 = vrot.lane.b32.xlu0 %v1086, 127
        %v1375 = vpop.permute.xlu0 %1374
        %1376 = vrot.lane.b32.xlu0 %v1135, 127
        %v1377 = vpop.permute.xlu0 %1376
        %1378 = vrot.lane.b32.xlu0 %v1137, 127
        %v1379 = vpop.permute.xlu0 %1378
        %1380 = vrot.lane.b32.xlu0 %v1186, 127
        %v1381 = vpop.permute.xlu0 %1380
        %1382 = vrot.lane.b32.xlu0 %v1188, 127
        %v1383 = vpop.permute.xlu0 %1382
        %1384 = vrot.lane.b32.xlu0 %v1237, 127
        %v1385 = vpop.permute.xlu0 %1384
        %1386 = vrot.lane.b32.xlu0 %v1239, 127
        %v1387 = vpop.permute.xlu0 %1386
        %vm1388 = vcmp.lt.s32.totalorder %v193, 127
        %v1389 = vsel %vm1388, %v1385, %v1387
        %v1390 = vsel %vm1388, %v1383, %v1385
        %v1391 = vsel %vm1388, %v1381, %v1383
        %v1392 = vsel %vm1388, %v1379, %v1381
        %v1393 = vsel %vm1388, %v1377, %v1379
        %v1394 = vsel %vm1388, %v1375, %v1377
        %v1395 = vsel %vm1388, %v1373, %v1375
        %v1396 = vsel %vm1388, %v1371, %v1373
        %v1397 = vsel %vm1388, %v1369, %v1371
        %v1398 = vsel %vm1388, %v1367, %v1369
        %v1399 = vsel %vm1388, %v1365, %v1367
        %v1400 = vsel %vm1388, %v1363, %v1365
        %v1401 = vsel %vm1388, %v1361, %v1363
        %v1402 = vsel %vm1388, %v1359, %v1361
        %v1403 = vsel %vm1388, %v1357, %v1359
        %v1404 = vsel %vm1388, %v1387, %v1357
        %v1405 = vsel %vm417, 1, 0
        %v1406 = vsel %vm418, 1, 0
        %v1407 = vsel %vm419, 1, 0
        %v1408 = vsel %vm420, 1, 0
        %v1409 = vsel %vm421, 1, 0
        %v1410 = vsel %vm422, 1, 0
        %v1411 = vsel %vm423, 1, 0
        %v1412 = vsel %vm424, 1, 0
        %v1413 = vsel %vm425, 1, 0
        %v1414 = vsel %vm426, 1, 0
        %v1415 = vsel %vm427, 1, 0
        %v1416 = vsel %vm428, 1, 0
        %v1417 = vsel %vm429, 1, 0
        %v1418 = vsel %vm430, 1, 0
        %v1419 = vsel %vm431, 1, 0
        %v1420 = vsel %vm432, 1, 0
        %vm1421 = vcmp.eq.s32.totalorder %v1405, 1
        %vm1422 = vcmp.eq.s32.totalorder %v1406, 1
        %vm1423 = vcmp.eq.s32.totalorder %v1407, 1
        %vm1424 = vcmp.eq.s32.totalorder %v1408, 1
        %vm1425 = vcmp.eq.s32.totalorder %v1409, 1
        %vm1426 = vcmp.eq.s32.totalorder %v1410, 1
        %vm1427 = vcmp.eq.s32.totalorder %v1411, 1
        %vm1428 = vcmp.eq.s32.totalorder %v1412, 1
        %vm1429 = vcmp.eq.s32.totalorder %v1413, 1
        %vm1430 = vcmp.eq.s32.totalorder %v1414, 1
        %vm1431 = vcmp.eq.s32.totalorder %v1415, 1
        %vm1432 = vcmp.eq.s32.totalorder %v1416, 1
        %vm1433 = vcmp.eq.s32.totalorder %v1417, 1
        %vm1434 = vcmp.eq.s32.totalorder %v1418, 1
        %vm1435 = vcmp.eq.s32.totalorder %v1419, 1
        %vm1436 = vcmp.eq.s32.totalorder %v1420, 1
        %v1437 = vsel %vm1421, 0.0, %v1403
        %v1438 = vsel %vm1422, 0.0, %v1402
        %v1439 = vsel %vm1423, 0.0, %v1401
        %v1440 = vsel %vm1424, 0.0, %v1400
        %v1441 = vsel %vm1425, 0.0, %v1399
        %v1442 = vsel %vm1426, 0.0, %v1398
        %v1443 = vsel %vm1427, 0.0, %v1397
        %v1444 = vsel %vm1428, 0.0, %v1396
        %v1445 = vsel %vm1429, 0.0, %v1395
        %v1446 = vsel %vm1430, 0.0, %v1394
        %v1447 = vsel %vm1431, 0.0, %v1393
        %v1448 = vsel %vm1432, 0.0, %v1392
        %v1449 = vsel %vm1433, 0.0, %v1391
        %v1450 = vsel %vm1434, 0.0, %v1390
        %v1451 = vsel %vm1435, 0.0, %v1389
        %v1452 = vsel %vm1436, 0.0, %v1404
        %v1453 = vadd.f32 %v1340, %v1437
        %v1454 = vadd.f32 %v1341, %v1438
        %v1455 = vadd.f32 %v1342, %v1439
        %v1456 = vadd.f32 %v1343, %v1440
        %v1457 = vadd.f32 %v1344, %v1441
        %v1458 = vadd.f32 %v1345, %v1442
        %v1459 = vadd.f32 %v1346, %v1443
        %v1460 = vadd.f32 %v1347, %v1444
        %v1461 = vadd.f32 %v1348, %v1445
        %v1462 = vadd.f32 %v1349, %v1446
        %v1463 = vadd.f32 %v1350, %v1447
        %v1464 = vadd.f32 %v1351, %v1448
        %v1465 = vadd.f32 %v1352, %v1449
        %v1466 = vadd.f32 %v1353, %v1450
        %v1467 = vadd.f32 %v1354, %v1451
        %v1468 = vadd.f32 %v1355, %v1452
        %v1469 = vrot.slane %v1453, 4
        %v1470 = vmax.f32 %v1453, %v1469
        %v1471 = vrot.slane %v1470, 2
        %v1472 = vmax.f32 %v1470, %v1471
        %v1473 = vrot.slane %v1472, 1
        %v1474 = vmax.f32 %v1472, %v1473
        %v1475 = vrot.slane %v1454, 4
        %v1476 = vmax.f32 %v1454, %v1475
        %v1477 = vrot.slane %v1476, 2
        %v1478 = vmax.f32 %v1476, %v1477
        %v1479 = vrot.slane %v1478, 1
        %v1480 = vmax.f32 %v1478, %v1479
        %v1481 = vrot.slane %v1455, 4
        %v1482 = vmax.f32 %v1455, %v1481
        %v1483 = vrot.slane %v1482, 2
        %v1484 = vmax.f32 %v1482, %v1483
        %v1485 = vrot.slane %v1484, 1
        %v1486 = vmax.f32 %v1484, %v1485
        %v1487 = vrot.slane %v1456, 4
        %v1488 = vmax.f32 %v1456, %v1487
        %v1489 = vrot.slane %v1488, 2
        %v1490 = vmax.f32 %v1488, %v1489
        %v1491 = vrot.slane %v1490, 1
        %v1492 = vmax.f32 %v1490, %v1491
        %v1493 = vrot.slane %v1457, 4
        %v1494 = vmax.f32 %v1457, %v1493
        %v1495 = vrot.slane %v1494, 2
        %v1496 = vmax.f32 %v1494, %v1495
        %v1497 = vrot.slane %v1496, 1
        %v1498 = vmax.f32 %v1496, %v1497
        %v1499 = vrot.slane %v1458, 4
        %v1500 = vmax.f32 %v1458, %v1499
        %v1501 = vrot.slane %v1500, 2
        %v1502 = vmax.f32 %v1500, %v1501
        %v1503 = vrot.slane %v1502, 1
        %v1504 = vmax.f32 %v1502, %v1503
        %v1505 = vrot.slane %v1459, 4
        %v1506 = vmax.f32 %v1459, %v1505
        %v1507 = vrot.slane %v1506, 2
        %v1508 = vmax.f32 %v1506, %v1507
        %v1509 = vrot.slane %v1508, 1
        %v1510 = vmax.f32 %v1508, %v1509
        %v1511 = vrot.slane %v1460, 4
        %v1512 = vmax.f32 %v1460, %v1511
        %v1513 = vrot.slane %v1512, 2
        %v1514 = vmax.f32 %v1512, %v1513
        %v1515 = vrot.slane %v1514, 1
        %v1516 = vmax.f32 %v1514, %v1515
        %v1517 = vrot.slane %v1461, 4
        %v1518 = vmax.f32 %v1461, %v1517
        %v1519 = vrot.slane %v1518, 2
        %v1520 = vmax.f32 %v1518, %v1519
        %v1521 = vrot.slane %v1520, 1
        %v1522 = vmax.f32 %v1520, %v1521
        %v1523 = vrot.slane %v1462, 4
        %v1524 = vmax.f32 %v1462, %v1523
        %v1525 = vrot.slane %v1524, 2
        %v1526 = vmax.f32 %v1524, %v1525
        %v1527 = vrot.slane %v1526, 1
        %v1528 = vmax.f32 %v1526, %v1527
        %v1529 = vrot.slane %v1463, 4
        %v1530 = vmax.f32 %v1463, %v1529
        %v1531 = vrot.slane %v1530, 2
        %v1532 = vmax.f32 %v1530, %v1531
        %v1533 = vrot.slane %v1532, 1
        %v1534 = vmax.f32 %v1532, %v1533
        %v1535 = vrot.slane %v1464, 4
        %v1536 = vmax.f32 %v1464, %v1535
        %v1537 = vrot.slane %v1536, 2
        %v1538 = vmax.f32 %v1536, %v1537
        %v1539 = vrot.slane %v1538, 1
        %v1540 = vmax.f32 %v1538, %v1539
        %v1541 = vrot.slane %v1465, 4
        %v1542 = vmax.f32 %v1465, %v1541
        %v1543 = vrot.slane %v1542, 2
        %v1544 = vmax.f32 %v1542, %v1543
        %v1545 = vrot.slane %v1544, 1
        %v1546 = vmax.f32 %v1544, %v1545
        %v1547 = vrot.slane %v1466, 4
        %v1548 = vmax.f32 %v1466, %v1547
        %v1549 = vrot.slane %v1548, 2
        %v1550 = vmax.f32 %v1548, %v1549
        %v1551 = vrot.slane %v1550, 1
        %v1552 = vmax.f32 %v1550, %v1551
        %v1553 = vrot.slane %v1467, 4
        %v1554 = vmax.f32 %v1467, %v1553
        %v1555 = vrot.slane %v1554, 2
        %v1556 = vmax.f32 %v1554, %v1555
        %v1557 = vrot.slane %v1556, 1
        %v1558 = vmax.f32 %v1556, %v1557
        %v1559 = vrot.slane %v1468, 4
        %v1560 = vmax.f32 %v1468, %v1559
        %v1561 = vrot.slane %v1560, 2
        %v1562 = vmax.f32 %v1560, %v1561
        %v1563 = vrot.slane %v1562, 1
        %v1564 = vmax.f32 %v1562, %v1563
        %v1565 = vld [vmem:[%s2] sm:$0xff]
        %1566 = vrot.lane.b32.xlu0 %v1474, 1
        %v1567 = vpop.permute.xlu0 %1566
        %1568 = vrot.lane.b32.xlu0 %v1480, 1
        %v1569 = vpop.permute.xlu0 %1568
        %1570 = vrot.lane.b32.xlu0 %v1486, 1
        %v1571 = vpop.permute.xlu0 %1570
        %1572 = vrot.lane.b32.xlu0 %v1492, 1
        %v1573 = vpop.permute.xlu0 %1572
        %1574 = vrot.lane.b32.xlu0 %v1498, 1
        %v1575 = vpop.permute.xlu0 %1574
        %1576 = vrot.lane.b32.xlu0 %v1504, 1
        %v1577 = vpop.permute.xlu0 %1576
        %1578 = vrot.lane.b32.xlu0 %v1510, 1
        %v1579 = vpop.permute.xlu0 %1578
        %1580 = vrot.lane.b32.xlu0 %v1516, 1
        %v1581 = vpop.permute.xlu0 %1580
        %1582 = vrot.lane.b32.xlu0 %v1522, 1
        %v1583 = vpop.permute.xlu0 %1582
        %1584 = vrot.lane.b32.xlu0 %v1528, 1
        %v1585 = vpop.permute.xlu0 %1584
        %1586 = vrot.lane.b32.xlu0 %v1534, 1
        %v1587 = vpop.permute.xlu0 %1586
        %1588 = vrot.lane.b32.xlu0 %v1540, 1
        %v1589 = vpop.permute.xlu0 %1588
        %1590 = vrot.lane.b32.xlu0 %v1546, 1
        %v1591 = vpop.permute.xlu0 %1590
        %1592 = vrot.lane.b32.xlu0 %v1552, 1
        %v1593 = vpop.permute.xlu0 %1592
        %1594 = vrot.lane.b32.xlu0 %v1558, 1
        %v1595 = vpop.permute.xlu0 %1594
        %1596 = vrot.lane.b32.xlu0 %v1564, 1
        %v1597 = vpop.permute.xlu0 %1596
        %v1598 = vsel %vm1275, %v1595, %v1597
        %v1599 = vsel %vm1275, %v1593, %v1595
        %v1600 = vsel %vm1275, %v1591, %v1593
        %v1601 = vsel %vm1275, %v1589, %v1591
        %v1602 = vsel %vm1275, %v1587, %v1589
        %v1603 = vsel %vm1275, %v1585, %v1587
        %v1604 = vsel %vm1275, %v1583, %v1585
        %v1605 = vsel %vm1275, %v1581, %v1583
        %v1606 = vsel %vm1275, %v1579, %v1581
        %v1607 = vsel %vm1275, %v1577, %v1579
        %v1608 = vsel %vm1275, %v1575, %v1577
        %v1609 = vsel %vm1275, %v1573, %v1575
        %v1610 = vsel %vm1275, %v1571, %v1573
        %v1611 = vsel %vm1275, %v1569, %v1571
        %v1612 = vsel %vm1275, %v1567, %v1569
        %v1613 = vsel %vm1275, %v1597, %v1567
        %v1614 = vsel %vm401, 0.0, %v1613
        %v1615 = vsel %vm402, 0.0, %v1612
        %v1616 = vsel %vm403, 0.0, %v1611
        %v1617 = vsel %vm404, 0.0, %v1610
        %v1618 = vsel %vm405, 0.0, %v1609
        %v1619 = vsel %vm406, 0.0, %v1608
        %v1620 = vsel %vm407, 0.0, %v1607
        %v1621 = vsel %vm408, 0.0, %v1606
        %v1622 = vsel %vm409, 0.0, %v1605
        %v1623 = vsel %vm410, 0.0, %v1604
        %v1624 = vsel %vm411, 0.0, %v1603
        %v1625 = vsel %vm412, 0.0, %v1602
        %v1626 = vsel %vm413, 0.0, %v1601
        %v1627 = vsel %vm414, 0.0, %v1600
        %v1628 = vsel %vm415, 0.0, %v1599
        %v1629 = vsel %vm416, 0.0, %v1598
        %1631 = vset.pattern.permute.xlu0 0
        %1632 = vperm.xlu0 %1631, %v1565
        %v1633 = vpop.permute.xlu0 %1632
        %v1635 = vlaneseq
        %v1636 = vshrl.u32 %v1635, 7
        %v1637 = vsub.s32 0, %v1636
        %v1638 = vrot.slane %v1614, %v1637
        %v1639 = vlaneseq
        %v1640 = vshrl.u32 %v1639, 7
        %v1641 = vsub.s32 0, %v1640
        %v1642 = vrot.slane %v1615, %v1641
        %v1643 = vlaneseq
        %v1644 = vshrl.u32 %v1643, 7
        %v1645 = vsub.s32 0, %v1644
        %v1646 = vrot.slane %v1616, %v1645
        %v1647 = vlaneseq
        %v1648 = vshrl.u32 %v1647, 7
        %v1649 = vsub.s32 0, %v1648
        %v1650 = vrot.slane %v1617, %v1649
        %v1651 = vlaneseq
        %v1652 = vshrl.u32 %v1651, 7
        %v1653 = vsub.s32 0, %v1652
        %v1654 = vrot.slane %v1618, %v1653
        %v1655 = vlaneseq
        %v1656 = vshrl.u32 %v1655, 7
        %v1657 = vsub.s32 0, %v1656
        %v1658 = vrot.slane %v1619, %v1657
        %v1659 = vlaneseq
        %v1660 = vshrl.u32 %v1659, 7
        %v1661 = vsub.s32 0, %v1660
        %v1662 = vrot.slane %v1620, %v1661
        %v1663 = vlaneseq
        %v1664 = vshrl.u32 %v1663, 7
        %v1665 = vsub.s32 0, %v1664
        %v1666 = vrot.slane %v1621, %v1665
        %v1667 = vlaneseq
        %v1668 = vshrl.u32 %v1667, 7
        %v1669 = vsub.s32 0, %v1668
        %v1670 = vrot.slane %v1622, %v1669
        %v1671 = vlaneseq
        %v1672 = vshrl.u32 %v1671, 7
        %v1673 = vsub.s32 0, %v1672
        %v1674 = vrot.slane %v1623, %v1673
        %v1675 = vlaneseq
        %v1676 = vshrl.u32 %v1675, 7
        %v1677 = vsub.s32 0, %v1676
        %v1678 = vrot.slane %v1624, %v1677
        %v1679 = vlaneseq
        %v1680 = vshrl.u32 %v1679, 7
        %v1681 = vsub.s32 0, %v1680
        %v1682 = vrot.slane %v1625, %v1681
        %v1683 = vlaneseq
        %v1684 = vshrl.u32 %v1683, 7
        %v1685 = vsub.s32 0, %v1684
        %v1686 = vrot.slane %v1626, %v1685
        %v1687 = vlaneseq
        %v1688 = vshrl.u32 %v1687, 7
        %v1689 = vsub.s32 0, %v1688
        %v1690 = vrot.slane %v1627, %v1689
        %v1691 = vlaneseq
        %v1692 = vshrl.u32 %v1691, 7
        %v1693 = vsub.s32 0, %v1692
        %v1694 = vrot.slane %v1628, %v1693
        %v1695 = vlaneseq
        %v1696 = vshrl.u32 %v1695, 7
        %v1697 = vsub.s32 0, %v1696
        %v1698 = vrot.slane %v1629, %v1697
        %v1699 = vmul.f32 %v1633, %v1638
        %v1700 = vmul.f32 %v1633, %v1642
        %v1701 = vmul.f32 %v1633, %v1646
        %v1702 = vmul.f32 %v1633, %v1650
        %v1703 = vmul.f32 %v1633, %v1654
        %v1704 = vmul.f32 %v1633, %v1658
        %v1705 = vmul.f32 %v1633, %v1662
        %v1706 = vmul.f32 %v1633, %v1666
        %v1707 = vmul.f32 %v1633, %v1670
        %v1708 = vmul.f32 %v1633, %v1674
        %v1709 = vmul.f32 %v1633, %v1678
        %v1710 = vmul.f32 %v1633, %v1682
        %v1711 = vmul.f32 %v1633, %v1686
        %v1712 = vmul.f32 %v1633, %v1690
        %v1713 = vmul.f32 %v1633, %v1694
        %v1714 = vmul.f32 %v1633, %v1698
        %1715 = vset.pattern.permute.xlu0 3
        %1716 = vperm.xlu0 %1715, %v1565
        %v1717 = vpop.permute.xlu0 %1716
        %v1719 = vadd.f32 %v1717, %v1699
        %v1720 = vadd.f32 %v1717, %v1700
        %v1721 = vadd.f32 %v1717, %v1701
        %v1722 = vadd.f32 %v1717, %v1702
        %v1723 = vadd.f32 %v1717, %v1703
        %v1724 = vadd.f32 %v1717, %v1704
        %v1725 = vadd.f32 %v1717, %v1705
        %v1726 = vadd.f32 %v1717, %v1706
        %v1727 = vadd.f32 %v1717, %v1707
        %v1728 = vadd.f32 %v1717, %v1708
        %v1729 = vadd.f32 %v1717, %v1709
        %v1730 = vadd.f32 %v1717, %v1710
        %v1731 = vadd.f32 %v1717, %v1711
        %v1732 = vadd.f32 %v1717, %v1712
        %v1733 = vadd.f32 %v1717, %v1713
        %v1734 = vadd.f32 %v1717, %v1714
        %1735 = vset.pattern.permute.xlu0 1
        %1736 = vperm.xlu0 %1735, %v1565
        %v1737 = vpop.permute.xlu0 %1736
        %v1739 = vmul.f32 %v1737, %v1474
        %v1740 = vmul.f32 %v1737, %v1480
        %v1741 = vmul.f32 %v1737, %v1486
        %v1742 = vmul.f32 %v1737, %v1492
        %v1743 = vmul.f32 %v1737, %v1498
        %v1744 = vmul.f32 %v1737, %v1504
        %v1745 = vmul.f32 %v1737, %v1510
        %v1746 = vmul.f32 %v1737, %v1516
        %v1747 = vmul.f32 %v1737, %v1522
        %v1748 = vmul.f32 %v1737, %v1528
        %v1749 = vmul.f32 %v1737, %v1534
        %v1750 = vmul.f32 %v1737, %v1540
        %v1751 = vmul.f32 %v1737, %v1546
        %v1752 = vmul.f32 %v1737, %v1552
        %v1753 = vmul.f32 %v1737, %v1558
        %v1754 = vmul.f32 %v1737, %v1564
        %v1755 = vadd.f32 %v1719, %v1739
        %v1756 = vadd.f32 %v1720, %v1740
        %v1757 = vadd.f32 %v1721, %v1741
        %v1758 = vadd.f32 %v1722, %v1742
        %v1759 = vadd.f32 %v1723, %v1743
        %v1760 = vadd.f32 %v1724, %v1744
        %v1761 = vadd.f32 %v1725, %v1745
        %v1762 = vadd.f32 %v1726, %v1746
        %v1763 = vadd.f32 %v1727, %v1747
        %v1764 = vadd.f32 %v1728, %v1748
        %v1765 = vadd.f32 %v1729, %v1749
        %v1766 = vadd.f32 %v1730, %v1750
        %v1767 = vadd.f32 %v1731, %v1751
        %v1768 = vadd.f32 %v1732, %v1752
        %v1769 = vadd.f32 %v1733, %v1753
        %v1770 = vadd.f32 %v1734, %v1754
        %1771 = vrot.lane.b32.xlu0 %v1474, 127
        %v1772 = vpop.permute.xlu0 %1771
        %1773 = vrot.lane.b32.xlu0 %v1480, 127
        %v1774 = vpop.permute.xlu0 %1773
        %1775 = vrot.lane.b32.xlu0 %v1486, 127
        %v1776 = vpop.permute.xlu0 %1775
        %1777 = vrot.lane.b32.xlu0 %v1492, 127
        %v1778 = vpop.permute.xlu0 %1777
        %1779 = vrot.lane.b32.xlu0 %v1498, 127
        %v1780 = vpop.permute.xlu0 %1779
        %1781 = vrot.lane.b32.xlu0 %v1504, 127
        %v1782 = vpop.permute.xlu0 %1781
        %1783 = vrot.lane.b32.xlu0 %v1510, 127
        %v1784 = vpop.permute.xlu0 %1783
        %1785 = vrot.lane.b32.xlu0 %v1516, 127
        %v1786 = vpop.permute.xlu0 %1785
        %1787 = vrot.lane.b32.xlu0 %v1522, 127
        %v1788 = vpop.permute.xlu0 %1787
        %1789 = vrot.lane.b32.xlu0 %v1528, 127
        %v1790 = vpop.permute.xlu0 %1789
        %1791 = vrot.lane.b32.xlu0 %v1534, 127
        %v1792 = vpop.permute.xlu0 %1791
        %1793 = vrot.lane.b32.xlu0 %v1540, 127
        %v1794 = vpop.permute.xlu0 %1793
        %1795 = vrot.lane.b32.xlu0 %v1546, 127
        %v1796 = vpop.permute.xlu0 %1795
        %1797 = vrot.lane.b32.xlu0 %v1552, 127
        %v1798 = vpop.permute.xlu0 %1797
        %1799 = vrot.lane.b32.xlu0 %v1558, 127
        %v1800 = vpop.permute.xlu0 %1799
        %1801 = vrot.lane.b32.xlu0 %v1564, 127
        %v1802 = vpop.permute.xlu0 %1801
        %v1803 = vsel %vm1388, %v1800, %v1802
        %v1804 = vsel %vm1388, %v1798, %v1800
        %v1805 = vsel %vm1388, %v1796, %v1798
        %v1806 = vsel %vm1388, %v1794, %v1796
        %v1807 = vsel %vm1388, %v1792, %v1794
        %v1808 = vsel %vm1388, %v1790, %v1792
        %v1809 = vsel %vm1388, %v1788, %v1790
        %v1810 = vsel %vm1388, %v1786, %v1788
        %v1811 = vsel %vm1388, %v1784, %v1786
        %v1812 = vsel %vm1388, %v1782, %v1784
        %v1813 = vsel %vm1388, %v1780, %v1782
        %v1814 = vsel %vm1388, %v1778, %v1780
        %v1815 = vsel %vm1388, %v1776, %v1778
        %v1816 = vsel %vm1388, %v1774, %v1776
        %v1817 = vsel %vm1388, %v1772, %v1774
        %v1818 = vsel %vm1388, %v1802, %v1772
        %v1819 = vsel %vm417, 0.0, %v1817
        %v1820 = vsel %vm418, 0.0, %v1816
        %v1821 = vsel %vm419, 0.0, %v1815
        %v1822 = vsel %vm420, 0.0, %v1814
        %v1823 = vsel %vm421, 0.0, %v1813
        %v1824 = vsel %vm422, 0.0, %v1812
        %v1825 = vsel %vm423, 0.0, %v1811
        %v1826 = vsel %vm424, 0.0, %v1810
        %v1827 = vsel %vm425, 0.0, %v1809
        %v1828 = vsel %vm426, 0.0, %v1808
        %v1829 = vsel %vm427, 0.0, %v1807
        %v1830 = vsel %vm428, 0.0, %v1806
        %v1831 = vsel %vm429, 0.0, %v1805
        %v1832 = vsel %vm430, 0.0, %v1804
        %v1833 = vsel %vm431, 0.0, %v1803
        %v1834 = vsel %vm432, 0.0, %v1818
        %1835 = vset.pattern.permute.xlu0 2
        %1836 = vperm.xlu0 %1835, %v1565
        %v1837 = vpop.permute.xlu0 %1836
        %v1839 = vlaneseq
        %v1840 = vshrl.u32 %v1839, 7
        %v1841 = vsub.s32 0, %v1840
        %v1842 = vrot.slane %v1819, %v1841
        %v1843 = vlaneseq
        %v1844 = vshrl.u32 %v1843, 7
        %v1845 = vsub.s32 0, %v1844
        %v1846 = vrot.slane %v1820, %v1845
        %v1847 = vlaneseq
        %v1848 = vshrl.u32 %v1847, 7
        %v1849 = vsub.s32 0, %v1848
        %v1850 = vrot.slane %v1821, %v1849
        %v1851 = vlaneseq
        %v1852 = vshrl.u32 %v1851, 7
        %v1853 = vsub.s32 0, %v1852
        %v1854 = vrot.slane %v1822, %v1853
        %v1855 = vlaneseq
        %v1856 = vshrl.u32 %v1855, 7
        %v1857 = vsub.s32 0, %v1856
        %v1858 = vrot.slane %v1823, %v1857
        %v1859 = vlaneseq
        %v1860 = vshrl.u32 %v1859, 7
        %v1861 = vsub.s32 0, %v1860
        %v1862 = vrot.slane %v1824, %v1861
        %v1863 = vlaneseq
        %v1864 = vshrl.u32 %v1863, 7
        %v1865 = vsub.s32 0, %v1864
        %v1866 = vrot.slane %v1825, %v1865
        %v1867 = vlaneseq
        %v1868 = vshrl.u32 %v1867, 7
        %v1869 = vsub.s32 0, %v1868
        %v1870 = vrot.slane %v1826, %v1869
        %v1871 = vlaneseq
        %v1872 = vshrl.u32 %v1871, 7
        %v1873 = vsub.s32 0, %v1872
        %v1874 = vrot.slane %v1827, %v1873
        %v1875 = vlaneseq
        %v1876 = vshrl.u32 %v1875, 7
        %v1877 = vsub.s32 0, %v1876
        %v1878 = vrot.slane %v1828, %v1877
        %v1879 = vlaneseq
        %v1880 = vshrl.u32 %v1879, 7
        %v1881 = vsub.s32 0, %v1880
        %v1882 = vrot.slane %v1829, %v1881
        %v1883 = vlaneseq
        %v1884 = vshrl.u32 %v1883, 7
        %v1885 = vsub.s32 0, %v1884
        %v1886 = vrot.slane %v1830, %v1885
        %v1887 = vlaneseq
        %v1888 = vshrl.u32 %v1887, 7
        %v1889 = vsub.s32 0, %v1888
        %v1890 = vrot.slane %v1831, %v1889
        %v1891 = vlaneseq
        %v1892 = vshrl.u32 %v1891, 7
        %v1893 = vsub.s32 0, %v1892
        %v1894 = vrot.slane %v1832, %v1893
        %v1895 = vlaneseq
        %v1896 = vshrl.u32 %v1895, 7
        %v1897 = vsub.s32 0, %v1896
        %v1898 = vrot.slane %v1833, %v1897
        %v1899 = vlaneseq
        %v1900 = vshrl.u32 %v1899, 7
        %v1901 = vsub.s32 0, %v1900
        %v1902 = vrot.slane %v1834, %v1901
        %v1903 = vmul.f32 %v1837, %v1842
        %v1904 = vmul.f32 %v1837, %v1846
        %v1905 = vmul.f32 %v1837, %v1850
        %v1906 = vmul.f32 %v1837, %v1854
        %v1907 = vmul.f32 %v1837, %v1858
        %v1908 = vmul.f32 %v1837, %v1862
        %v1909 = vmul.f32 %v1837, %v1866
        %v1910 = vmul.f32 %v1837, %v1870
        %v1911 = vmul.f32 %v1837, %v1874
        %v1912 = vmul.f32 %v1837, %v1878
        %v1913 = vmul.f32 %v1837, %v1882
        %v1914 = vmul.f32 %v1837, %v1886
        %v1915 = vmul.f32 %v1837, %v1890
        %v1916 = vmul.f32 %v1837, %v1894
        %v1917 = vmul.f32 %v1837, %v1898
        %v1918 = vmul.f32 %v1837, %v1902
        %v1919 = vadd.f32 %v1755, %v1903
        %v1920 = vadd.f32 %v1756, %v1904
        %v1921 = vadd.f32 %v1757, %v1905
        %v1922 = vadd.f32 %v1758, %v1906
        %v1923 = vadd.f32 %v1759, %v1907
        %v1924 = vadd.f32 %v1760, %v1908
        %v1925 = vadd.f32 %v1761, %v1909
        %v1926 = vadd.f32 %v1762, %v1910
        %v1927 = vadd.f32 %v1763, %v1911
        %v1928 = vadd.f32 %v1764, %v1912
        %v1929 = vadd.f32 %v1765, %v1913
        %v1930 = vadd.f32 %v1766, %v1914
        %v1931 = vadd.f32 %v1767, %v1915
        %v1932 = vadd.f32 %v1768, %v1916
        %v1933 = vadd.f32 %v1769, %v1917
        %v1934 = vadd.f32 %v1770, %v1918
        %v1935 = vrot.slane %v1919, 4
        %v1936 = vmax.f32 %v1919, %v1935
        %v1937 = vrot.slane %v1936, 2
        %v1938 = vmax.f32 %v1936, %v1937
        %v1939 = vrot.slane %v1938, 1
        %v1940 = vmax.f32 %v1938, %v1939
        %v1941 = vrot.slane %v1920, 4
        %v1942 = vmax.f32 %v1920, %v1941
        %v1943 = vrot.slane %v1942, 2
        %v1944 = vmax.f32 %v1942, %v1943
        %v1945 = vrot.slane %v1944, 1
        %v1946 = vmax.f32 %v1944, %v1945
        %v1947 = vrot.slane %v1921, 4
        %v1948 = vmax.f32 %v1921, %v1947
        %v1949 = vrot.slane %v1948, 2
        %v1950 = vmax.f32 %v1948, %v1949
        %v1951 = vrot.slane %v1950, 1
        %v1952 = vmax.f32 %v1950, %v1951
        %v1953 = vrot.slane %v1922, 4
        %v1954 = vmax.f32 %v1922, %v1953
        %v1955 = vrot.slane %v1954, 2
        %v1956 = vmax.f32 %v1954, %v1955
        %v1957 = vrot.slane %v1956, 1
        %v1958 = vmax.f32 %v1956, %v1957
        %v1959 = vrot.slane %v1923, 4
        %v1960 = vmax.f32 %v1923, %v1959
        %v1961 = vrot.slane %v1960, 2
        %v1962 = vmax.f32 %v1960, %v1961
        %v1963 = vrot.slane %v1962, 1
        %v1964 = vmax.f32 %v1962, %v1963
        %v1965 = vrot.slane %v1924, 4
        %v1966 = vmax.f32 %v1924, %v1965
        %v1967 = vrot.slane %v1966, 2
        %v1968 = vmax.f32 %v1966, %v1967
        %v1969 = vrot.slane %v1968, 1
        %v1970 = vmax.f32 %v1968, %v1969
        %v1971 = vrot.slane %v1925, 4
        %v1972 = vmax.f32 %v1925, %v1971
        %v1973 = vrot.slane %v1972, 2
        %v1974 = vmax.f32 %v1972, %v1973
        %v1975 = vrot.slane %v1974, 1
        %v1976 = vmax.f32 %v1974, %v1975
        %v1977 = vrot.slane %v1926, 4
        %v1978 = vmax.f32 %v1926, %v1977
        %v1979 = vrot.slane %v1978, 2
        %v1980 = vmax.f32 %v1978, %v1979
        %v1981 = vrot.slane %v1980, 1
        %v1982 = vmax.f32 %v1980, %v1981
        %v1983 = vrot.slane %v1927, 4
        %v1984 = vmax.f32 %v1927, %v1983
        %v1985 = vrot.slane %v1984, 2
        %v1986 = vmax.f32 %v1984, %v1985
        %v1987 = vrot.slane %v1986, 1
        %v1988 = vmax.f32 %v1986, %v1987
        %v1989 = vrot.slane %v1928, 4
        %v1990 = vmax.f32 %v1928, %v1989
        %v1991 = vrot.slane %v1990, 2
        %v1992 = vmax.f32 %v1990, %v1991
        %v1993 = vrot.slane %v1992, 1
        %v1994 = vmax.f32 %v1992, %v1993
        %v1995 = vrot.slane %v1929, 4
        %v1996 = vmax.f32 %v1929, %v1995
        %v1997 = vrot.slane %v1996, 2
        %v1998 = vmax.f32 %v1996, %v1997
        %v1999 = vrot.slane %v1998, 1
        %v2000 = vmax.f32 %v1998, %v1999
        %v2001 = vrot.slane %v1930, 4
        %v2002 = vmax.f32 %v1930, %v2001
        %v2003 = vrot.slane %v2002, 2
        %v2004 = vmax.f32 %v2002, %v2003
        %v2005 = vrot.slane %v2004, 1
        %v2006 = vmax.f32 %v2004, %v2005
        %v2007 = vrot.slane %v1931, 4
        %v2008 = vmax.f32 %v1931, %v2007
        %v2009 = vrot.slane %v2008, 2
        %v2010 = vmax.f32 %v2008, %v2009
        %v2011 = vrot.slane %v2010, 1
        %v2012 = vmax.f32 %v2010, %v2011
        %v2013 = vrot.slane %v1932, 4
        %v2014 = vmax.f32 %v1932, %v2013
        %v2015 = vrot.slane %v2014, 2
        %v2016 = vmax.f32 %v2014, %v2015
        %v2017 = vrot.slane %v2016, 1
        %v2018 = vmax.f32 %v2016, %v2017
        %v2019 = vrot.slane %v1933, 4
        %v2020 = vmax.f32 %v1933, %v2019
        %v2021 = vrot.slane %v2020, 2
        %v2022 = vmax.f32 %v2020, %v2021
        %v2023 = vrot.slane %v2022, 1
        %v2024 = vmax.f32 %v2022, %v2023
        %v2025 = vrot.slane %v1934, 4
        %v2026 = vmax.f32 %v1934, %v2025
        %v2027 = vrot.slane %v2026, 2
        %v2028 = vmax.f32 %v2026, %v2027
        %v2029 = vrot.slane %v2028, 1
        %v2030 = vmax.f32 %v2028, %v2029
        %v2047 = vcombine.low %v1940, %v1946
        %v2048 = vcombine.low %v1952, %v1958
        %v2049 = vcombine.low %v1964, %v1970
        %v2050 = vcombine.low %v1976, %v1982
        %v2052 = vunpack.c.l.s4 1966171168
        %v2053 = vunpack.c.0.s8 %v2052
        %v2054 = vlaneseq
        %v2055 = vshrl.u32 %v2054, 7
        %v2056 = vsub.s32 %v2053, %v2055
        %v2057 = vrot.slane %v2047, %v2056
        %v2059 = vunpack.c.l.s4 1966171168
        %v2060 = vunpack.c.0.s8 %v2059
        %v2061 = vlaneseq
        %v2062 = vshrl.u32 %v2061, 7
        %v2063 = vsub.s32 %v2060, %v2062
        %v2064 = vrot.slane %v2048, %v2063
        %v2066 = vunpack.c.l.s4 1966171168
        %v2067 = vunpack.c.0.s8 %v2066
        %v2068 = vlaneseq
        %v2069 = vshrl.u32 %v2068, 7
        %v2070 = vsub.s32 %v2067, %v2069
        %v2071 = vrot.slane %v2049, %v2070
        %v2073 = vunpack.c.l.s4 1966171168
        %v2074 = vunpack.c.0.s8 %v2073
        %v2075 = vlaneseq
        %v2076 = vshrl.u32 %v2075, 7
        %v2077 = vsub.s32 %v2074, %v2076
        %v2078 = vrot.slane %v2050, %v2077
        %v2079 = vcombine.low %v2057, %v2064
        %v2080 = vcombine.low %v2071, %v2078
        %v2082 = vunpack.c.l.s4 1966171168
        %v2083 = vunpack.c.0.s8 %v2082
        %v2084 = vlaneseq
        %v2085 = vshrl.u32 %v2084, 7
        %v2086 = vsub.s32 %v2083, %v2085
        %v2087 = vrot.slane %v2079, %v2086
        %v2089 = vunpack.c.l.s4 1966171168
        %v2090 = vunpack.c.0.s8 %v2089
        %v2091 = vlaneseq
        %v2092 = vshrl.u32 %v2091, 7
        %v2093 = vsub.s32 %v2090, %v2092
        %v2094 = vrot.slane %v2080, %v2093
        %v2095 = vcombine.low %v2087, %v2094
        %v2096 = vcombine.low %v1988, %v1994
        %v2097 = vcombine.low %v2000, %v2006
        %v2098 = vcombine.low %v2012, %v2018
        %v2099 = vcombine.low %v2024, %v2030
        %v2101 = vunpack.c.l.s4 1966171168
        %v2102 = vunpack.c.0.s8 %v2101
        %v2103 = vlaneseq
        %v2104 = vshrl.u32 %v2103, 7
        %v2105 = vsub.s32 %v2102, %v2104
        %v2106 = vrot.slane %v2096, %v2105
        %v2108 = vunpack.c.l.s4 1966171168
        %v2109 = vunpack.c.0.s8 %v2108
        %v2110 = vlaneseq
        %v2111 = vshrl.u32 %v2110, 7
        %v2112 = vsub.s32 %v2109, %v2111
        %v2113 = vrot.slane %v2097, %v2112
        %v2115 = vunpack.c.l.s4 1966171168
        %v2116 = vunpack.c.0.s8 %v2115
        %v2117 = vlaneseq
        %v2118 = vshrl.u32 %v2117, 7
        %v2119 = vsub.s32 %v2116, %v2118
        %v2120 = vrot.slane %v2098, %v2119
        %v2122 = vunpack.c.l.s4 1966171168
        %v2123 = vunpack.c.0.s8 %v2122
        %v2124 = vlaneseq
        %v2125 = vshrl.u32 %v2124, 7
        %v2126 = vsub.s32 %v2123, %v2125
        %v2127 = vrot.slane %v2099, %v2126
        %v2128 = vcombine.low %v2106, %v2113
        %v2129 = vcombine.low %v2120, %v2127
        %v2131 = vunpack.c.l.s4 1966171168
        %v2132 = vunpack.c.0.s8 %v2131
        %v2133 = vlaneseq
        %v2134 = vshrl.u32 %v2133, 7
        %v2135 = vsub.s32 %v2132, %v2134
        %v2136 = vrot.slane %v2128, %v2135
        %v2138 = vunpack.c.l.s4 1966171168
        %v2139 = vunpack.c.0.s8 %v2138
        %v2140 = vlaneseq
        %v2141 = vshrl.u32 %v2140, 7
        %v2142 = vsub.s32 %v2139, %v2141
        %v2143 = vrot.slane %v2129, %v2142
        %v2144 = vcombine.low %v2136, %v2143
        %2147 = vst [vmem:[%s188] sm:$0xff] %v2095
        %2148 = vst [vmem:[%s188 + $0x8] sm:$0xff] %v2144
        %s2149 = sand.u32 %s96, 1
        %s2150 = scalar_lea.sflag [#allocation4], %s2149
        %s2151 = sand.u32 %s96, 1
        %s2152 = smul.addr %s2151, 16
        %s2153 = scalar_lea.vmem [#allocation5], %s2152
        // Predicated region
        $region37: #{tpu_custom_call.1} parent=31 // pred_check
          %p2154 = pneg %p106
        $region38: #{tpu_custom_call.1} parent=31 // pred_check_branch
          %2156 = sbr.rel (%p2154) target = $region40
        $region39: #{tpu_custom_call.1} parent=31 // pred_region
          %s2157 = smul.u32 16, %s20
          %s2159 = ssub.s32 256, 256
          %2160 = vsyncadd %s2150, %s2159
          %s2161 = smul.addr %s2157, 16
          %s2162 = scalar_lea.hbm %s3, %s2161
          %s2164 = sshll.u32 %s2153, 4
          %s2165 = int_to_ptr.vmem [resolvable:$true] %s2164
          %2167 = dma.vmem_to_hbm [thread:$0]  %s2165, 256, %s2162, %s2150
        $region40: #{tpu_custom_call.1} parent=31 // pred_fallthru
          _
      $region32: #{tpu_custom_call.1} parent=5 // pred_fallthru
        _
      %p2168 = scmp.le.s32.totalorder 2, %s15
      // Predicated region
      $region41: #{tpu_custom_call.1} parent=5 // pred_check
        %p2169 = pneg %p2168
      $region42: #{tpu_custom_call.1} parent=5 // pred_check_branch
        %2171 = sbr.rel (%p2169) target = $region44
      $region43: #{tpu_custom_call.1} parent=5 // pred_region
        %s2172 = ssub.s32 %s15, 2
        // Predicated region
        $region45: #{tpu_custom_call.1} parent=43 // pred_check
          %p2173 = pneg %p112
        $region46: #{tpu_custom_call.1} parent=43 // pred_check_branch
          %2175 = sbr.rel (%p2173) target = $region48
        $region47: #{tpu_custom_call.1} parent=43 // pred_region
          %s2176 = sand.u32 %s97, 1
          %s2177 = scalar_lea.sflag [#allocation4], %s2176
          %s2178 = sand.u32 %s97, 1
          %s2179 = smul.addr %s2178, 16
          %s2180 = scalar_lea.vmem [#allocation5], %s2179
          %2181 = dma.done %s2177, 256
        $region48: #{tpu_custom_call.1} parent=43 // pred_fallthru
          _
      $region44: #{tpu_custom_call.1} parent=5 // pred_fallthru
        _
    $region6: #{tpu_custom_call.1} parent=1 // loop_footer
      %s19 = sadd.s32 1, %s15
    $region7: #{tpu_custom_call.1} parent=1 // loop_footer_branch
      %14 = sbr.rel target = $region3
    $region8: #{tpu_custom_call.1} parent=1 // loop_exit
      _
    %2182 = vsyncpa [#allocation3], 1
    %s2183 = scalar_lea.sflag [#allocation3], 1
    %2184 = vsyncpa %s2183, 1
    %2185 = vsyncpa [#allocation4], 1
    %s2186 = scalar_lea.sflag [#allocation4], 1
    %2187 = vsyncpa %s2186, 1

</llo_original>
